<compile_context>
chip_gen: v6e
topology: v6e:2x2x1
jax: 0.10.0
libtpu: 0.0.40
codegen_flags: <defaults>
</compile_context>

<pallas_src>
import functools

import jax
import jax.numpy as jnp
from jax.experimental import pallas as pl
from jax.experimental.pallas import tpu as pltpu

ACT_DTYPE = jnp.bfloat16                # inter-layer activation dtype
VMEM_LIMIT = 48 * 1024 * 1024           # safe on v7x (64 MiB), plenty on v5e/v6e
IM2COL_BUDGET = 8 * 1024 * 1024         # bf16 bytes of the per-H-tile im2col value
IN_BLOCK_BUDGET = 6 * 1024 * 1024       # bf16 bytes of one conv input depth block


def _round_up(x, m):
    return ((x + m - 1) // m) * m


# ----------------------------------------------------------------------------
# Layer tiling plan: depth-tile size of the fused conv, and the shape of the
# halo-duplicated prep output it consumes.
# ----------------------------------------------------------------------------
def plan_depth_tiles(cin, d_in, h_in, w_in, k, stride):
    cin_pad = _round_up(cin, 8)
    pad = k // 2
    hp, wp = h_in + 2 * pad, w_in + 2 * pad
    d_pool = d_in - 1 if stride == 1 else d_in // 2     # pooled output depth
    plane_bytes = cin_pad * hp * wp * 2
    max_planes = max(k + 1, IN_BLOCK_BUDGET // plane_bytes)
    if stride == 1:
        tdp = max_planes - k
    else:
        tdp = (max_planes - k + 1) // 2
    tdp = max(1, min(tdp, d_pool))
    cdblk = tdp + k if stride == 1 else 2 * tdp + k - 1
    n_dt = -(-d_pool // tdp)
    return dict(pad=pad, cin_pad=cin_pad, tdp=tdp, cdblk=cdblk, n_dt=n_dt,
                d_pool=d_pool, hp=hp, wp=wp)


# ----------------------------------------------------------------------------
# 1) prep kernel: BN affine (per-channel scale/shift) + zero pad (D/H/W) +
#    channel pad (cin -> cin_pad) + bf16 cast + depth-halo duplication.
#    One FULL-block store per plane (built in registers).
# ----------------------------------------------------------------------------
def _prep_kernel(x_ref, s_ref, t_ref, o_ref, *, pad, d_in, tds,
                 cin, cin_pad, h_in, w_in):
    ti = pl.program_id(1)
    j = pl.program_id(2)
    src_d = ti * tds + j - pad          # unpadded source depth plane
    valid = (src_d >= 0) & (src_d < d_in)
    hp, wp = h_in + 2 * pad, w_in + 2 * pad

    @pl.when(valid)
    def _():
        y = x_ref[0, :, 0].astype(jnp.float32)           # (cin, h, w)
        s = s_ref[...]                                    # (cin, 1)
        t = t_ref[...]
        y = (y * s[:, :, None] + t[:, :, None]).astype(o_ref.dtype)
        zw = jnp.zeros((cin, h_in, pad), o_ref.dtype)
        y = jnp.concatenate([zw, y, zw], axis=2)          # (cin, h, wp)
        zh = jnp.zeros((cin, pad, wp), o_ref.dtype)
        y = jnp.concatenate([zh, y, zh], axis=1)          # (cin, hp, wp)
        if cin_pad > cin:
            zc = jnp.zeros((cin_pad - cin, hp, wp), o_ref.dtype)
            y = jnp.concatenate([y, zc], axis=0)          # (cin_pad, hp, wp)
        o_ref[0, :, 0] = y

    @pl.when(jnp.logical_not(valid))
    def _():
        o_ref[0, :, 0] = jnp.zeros((cin_pad, hp, wp), o_ref.dtype)


def bn_apply_pad_tiles(x, scale, shift, *, pad, tdp, stride, cdblk, n_dt):
    """scale[c]*x[:,c] + shift[c], zero-padded on D/H/W, channels padded to a
    multiple of 8, cast to bf16 and emitted as depth-halo-duplicated tiles:
      out[ni*n_dt + ti, :, j] = padded_input[ni, :, ti*tdp*stride + j]  (0 past end)."""
    n, cin, d_in, h_in, w_in = x.shape
    cin_pad = _round_up(cin, 8)
    hp, wp = h_in + 2 * pad, w_in + 2 * pad
    tds = tdp * stride
    kernel = functools.partial(_prep_kernel, pad=pad, d_in=d_in, tds=tds,
                               cin=cin, cin_pad=cin_pad, h_in=h_in, w_in=w_in)
    return pl.pallas_call(
        kernel,
        out_shape=jax.ShapeDtypeStruct((n * n_dt, cin_pad, cdblk, hp, wp), ACT_DTYPE),
        grid_spec=pltpu.PrefetchScalarGridSpec(
            num_scalar_prefetch=0,
            grid=(n, n_dt, cdblk),
            in_specs=[
                pl.BlockSpec((1, cin, 1, h_in, w_in),
                             lambda ni, ti, j: (ni, 0,
                                                jnp.clip(ti * tds + j - pad, 0, d_in - 1),
                                                0, 0)),
                pl.BlockSpec((cin, 1), lambda ni, ti, j: (0, 0)),
                pl.BlockSpec((cin, 1), lambda ni, ti, j: (0, 0)),
            ],
            out_specs=pl.BlockSpec((1, cin_pad, 1, hp, wp),
                                   lambda ni, ti, j: (ni * n_dt + ti, 0, j, 0, 0)),
        ),
        compiler_params=pltpu.CompilerParams(
            dimension_semantics=("parallel", "parallel", "parallel")),
    )(x, scale, shift)


# ----------------------------------------------------------------------------
# 2) Fused Conv3d + bias + ReLU + MaxPool3d(kernel=2, stride=1 or 2) + BN sums.
#    Grid = (batch, pooled-depth tile).  One prep tile in, TDP pooled planes out.
# ----------------------------------------------------------------------------
def _conv_pool_kernel(x_ref, w_ref, b_ref, o_ref, sum_ref, sq_ref,
                      conv_ref, sp_ref, *, kd_, kh_, kw_, cin_pad, cout,
                      h_c, w_c, h_p, w_p, th, th_starts, tdp, d_pool, stride):
    ti = pl.program_id(1)

    @pl.when(ti == 0)
    def _():
        sum_ref[...] = jnp.zeros_like(sum_ref)
        sq_ref[...] = jnp.zeros_like(sq_ref)

    wmat = w_ref[...]                       # (cout, K_pad) bf16, loaded once
    bias = b_ref[...]                       # (cout, 1) f32

    n_pool = jnp.minimum(tdp, d_pool - ti * tdp)          # valid pooled planes here
    n_conv = n_pool + 1 if stride == 1 else 2 * n_pool    # conv planes to compute

    def spool(jc):
        # One full conv plane (bias + ReLU fused), H-tiled im2col matmuls,
        # then 2x2 spatial max-pool.  jc is the (dynamic) plane index in the tile.
        for h0 in th_starts:                               # static, 8-aligned starts
            pieces = []
            for kd in range(kd_):
                for kh in range(kh_):
                    for kw in range(kw_):
                        sl = x_ref[0, :, pl.ds(jc + kd, 1),
                                   h0 + kh:h0 + kh + th, kw:kw + w_c]
                        pieces.append(sl.reshape(cin_pad, th * w_c))
            a = jnp.concatenate(pieces, axis=0)            # (K_pad, th*w_c), aligned
            acc = jnp.dot(wmat, a, preferred_element_type=jnp.float32)
            acc = jnp.maximum(acc + bias, 0.0)
            conv_ref[:, h0:h0 + th, :] = acc.reshape(cout, th, w_c)
        p = conv_ref[...]
        m = jnp.maximum(jnp.maximum(p[:, :h_c - 1, :w_c - 1], p[:, :h_c - 1, 1:]),
                        jnp.maximum(p[:, 1:, :w_c - 1], p[:, 1:, 1:]))
        if stride == 2:
            m = m[:, 0:2 * h_p:2, 0:2 * w_p:2]             # in-kernel H/W subsample
        return m                                           # (cout, h_p, w_p) f32

    def emit(dp, pooled):
        o_ref[0, :, pl.ds(dp, 1), :, :] = pooled[:, None].astype(o_ref.dtype)
        sum_ref[...] += jnp.sum(pooled, axis=(1, 2))[None, :, None]
        sq_ref[...] += jnp.sum(pooled * pooled, axis=(1, 2))[None, :, None]

    def body(jc, carry):
        sp = spool(jc)
        if stride == 1:
            @pl.when(jc >= 1)
            def _():
                emit(jc - 1, jnp.maximum(sp_ref[...], sp))
            sp_ref[...] = sp
        else:
            @pl.when(jc % 2 == 0)
            def _():
                sp_ref[...] = sp

            @pl.when(jc % 2 == 1)
            def _():
                emit(jc // 2, jnp.maximum(sp_ref[...], sp))
        return carry

    jax.lax.fori_loop(0, n_conv, body, 0)


def conv_relu_pool(xt, w, b, *, n, d_pool, stride, tdp, n_dt):
    """xt: halo-duplicated padded tiles (n*n_dt, cin_pad, cdblk, hp, wp) bf16.
       w : torch-layout weights (cout, cin, K, K, K) f32.  b: (cout,) f32.
       Returns pooled activation (n, cout, d_pool, h_p, w_p) bf16 plus per-batch
       per-channel sum / sum-of-squares (n, cout, 1) f32 of the pooled tensor."""
    _, cin_pad, cdblk, hp, wp = xt.shape
    cout, cin, kd_, kh_, kw_ = w.shape
    h_c, w_c = hp - kh_ + 1, wp - kw_ + 1
    if stride == 1:
        h_p, w_p = h_c - 1, w_c - 1
    else:
        h_p, w_p = h_c // 2, w_c // 2
    k_pad = kd_ * kh_ * kw_ * cin_pad

    # weights -> (cout, K_pad), columns ordered (kd, kh, kw, cin_pad) with zero
    # columns for the padded channels (matches the aligned im2col rows).
    wk = jnp.transpose(w, (0, 2, 3, 4, 1))
    if cin_pad > cin:
        wk = jnp.pad(wk, ((0, 0), (0, 0), (0, 0), (0, 0), (0, cin_pad - cin)))
    wk = wk.reshape(cout, k_pad).astype(ACT_DTYPE)
    b2 = b.reshape(cout, 1).astype(jnp.float32)

    # H tiling: near-even tiles, starts multiples of 8, static clamped tail.
    th_max = max(8, IM2COL_BUDGET // (k_pad * w_c * 2))
    if th_max >= h_c:
        th, th_starts = h_c, (0,)
    else:
        n_t = -(-h_c // th_max)
        th = min(h_c, _round_up(-(-h_c // n_t), 8))
        starts = list(range(0, h_c - th + 1, th))
        if starts[-1] + th < h_c:
            starts.append(h_c - th)        # idempotent overlap
        th_starts = tuple(starts)

    kernel = functools.partial(
        _conv_pool_kernel, kd_=kd_, kh_=kh_, kw_=kw_, cin_pad=cin_pad, cout=cout,
        h_c=h_c, w_c=w_c, h_p=h_p, w_p=w_p, th=th, th_starts=th_starts,
        tdp=tdp, d_pool=d_pool, stride=stride)

    out_shape = (
        jax.ShapeDtypeStruct((n, cout, d_pool, h_p, w_p), ACT_DTYPE),
        jax.ShapeDtypeStruct((n, cout, 1), jnp.float32),
        jax.ShapeDtypeStruct((n, cout, 1), jnp.float32),
    )
    out_specs = (
        pl.BlockSpec((1, cout, tdp, h_p, w_p), lambda ni, ti: (ni, 0, ti, 0, 0)),
        pl.BlockSpec((1, cout, 1), lambda ni, ti: (ni, 0, 0)),
        pl.BlockSpec((1, cout, 1), lambda ni, ti: (ni, 0, 0)),
    )
    return pl.pallas_call(
        kernel,
        out_shape=out_shape,
        grid_spec=pltpu.PrefetchScalarGridSpec(
            num_scalar_prefetch=0,
            grid=(n, n_dt),
            in_specs=[
                pl.BlockSpec((1, cin_pad, cdblk, hp, wp),
                             lambda ni, ti: (ni * n_dt + ti, 0, 0, 0, 0)),
                pl.BlockSpec((cout, k_pad), lambda ni, ti: (0, 0)),
                pl.BlockSpec((cout, 1), lambda ni, ti: (0, 0)),
            ],
            out_specs=out_specs,
            scratch_shapes=[
                pltpu.VMEM((cout, h_c, w_c), jnp.float32),   # one conv plane
                pltpu.VMEM((cout, h_p, w_p), jnp.float32),   # prev spatially-pooled plane
            ],
        ),
        compiler_params=pltpu.CompilerParams(
            dimension_semantics=("parallel", "arbitrary"),
            vmem_limit_bytes=VMEM_LIMIT),
    )(xt, wk, b2)


# ----------------------------------------------------------------------------
# fsc_BN3d scale/shift from the fused per-channel sums.
# TODO(synk): fsc_BN3d source not provided; modeled as BatchNorm3d with batch
# statistics and a factorized (embed_size) affine: gamma = 1 + G @ e, beta = B @ e.
# ----------------------------------------------------------------------------
def fsc_bn3d_scale_shift(ssum, ssq, count, p, eps=1e-5):
    mean = ssum[:, 0] / count
    var = jnp.maximum(ssq[:, 0] / count - mean * mean, 0.0)
    gamma = 1.0 + p["gamma_proj"] @ p["embed"]
    beta = p["beta_proj"] @ p["embed"]
    scale = gamma / jnp.sqrt(var + eps)
    shift = beta - mean * scale
    c = scale.shape[0]
    return (scale.reshape(c, 1).astype(jnp.float32),
            shift.reshape(c, 1).astype(jnp.float32))


# ----------------------------------------------------------------------------
# 3) FC head: fused (x*scale + shift) @ W^T + b, optional ReLU.  scale/shift
#    fold the previous BatchNorm (1d or the last fsc_BN3d) into the matmul.
# ----------------------------------------------------------------------------
def _linear_kernel(x_ref, s_ref, t_ref, w_ref, b_ref, o_ref, *, relu):
    x = x_ref[...].astype(jnp.float32)
    x = x * s_ref[...] + t_ref[...]
    y = jnp.dot(x.astype(w_ref.dtype), w_ref[...],
                preferred_element_type=jnp.float32) + b_ref[...]
    if relu:
        y = jnp.maximum(y, 0.0)
    o_ref[...] = y.astype(o_ref.dtype)


def linear(x, scale, shift, w, b, relu):
    bsz, fin = x.shape
    fout = w.shape[0]
    wt = w.T.astype(ACT_DTYPE)                 # bf16 weight DMA (f32 accumulate)
    b2 = b.reshape(1, fout).astype(jnp.float32)
    kernel = functools.partial(_linear_kernel, relu=relu)
    return pl.pallas_call(
        kernel,
        out_shape=jax.ShapeDtypeStruct((bsz, fout), jnp.float32),
        grid_spec=pltpu.PrefetchScalarGridSpec(
            num_scalar_prefetch=0,
            grid=(1,),
            in_specs=[pl.BlockSpec((bsz, fin), lambda i: (0, 0)),
                      pl.BlockSpec((1, fin), lambda i: (0, 0)),
                      pl.BlockSpec((1, fin), lambda i: (0, 0)),
                      pl.BlockSpec((fin, fout), lambda i: (0, 0)),
                      pl.BlockSpec((1, fout), lambda i: (0, 0))],
            out_specs=pl.BlockSpec((bsz, fout), lambda i: (0, 0)),
        ),
    )(x, scale, shift, wt, b2)


def bn1d_scale_shift(h, gamma, beta, eps=1e-5):
    # BatchNorm1d, training-mode (batch statistics, biased variance).
    mean = jnp.mean(h, axis=0)
    var = jnp.mean((h - mean) ** 2, axis=0)
    scale = gamma / jnp.sqrt(var + eps)
    shift = beta - mean * scale
    return scale.reshape(1, -1), shift.reshape(1, -1)


# ----------------------------------------------------------------------------
# Parameters (deterministic synthetic init) and forward pass
# ----------------------------------------------------------------------------
# (cin, cout, kernel, pool_stride, embed_size) for conv1..conv19
CONV_CFG = [
    (1, 5, 5, 1, 2), (5, 5, 5, 1, 2), (5, 5, 3, 1, 2), (5, 5, 3, 1, 2),
    (5, 5, 3, 1, 2),
    (5, 10, 3, 2, 2), (10, 10, 3, 1, 2), (10, 10, 3, 1, 2), (10, 10, 3, 1, 2),
    (10, 10, 3, 1, 2), (10, 10, 3, 1, 2),
    (10, 20, 3, 2, 4), (20, 20, 3, 1, 4), (20, 20, 3, 1, 4), (20, 20, 3, 1, 4),
    (20, 20, 3, 1, 4), (20, 20, 3, 1, 4),
    (20, 40, 3, 2, 8), (40, 80, 3, 2, 10),
]
FC_CFG = [(80 * 7 * 7 * 3, 65), (65, 40), (40, 20), (20, 3)]


def init_params(key):
    params = {"conv": [], "bn3d": [], "fc": [], "bn1d": []}
    for (cin, cout, k, _, e) in CONV_CFG:
        key, k1, k2, k3, k4, k5 = jax.random.split(key, 6)
        fan_in = cin * k * k * k
        params["conv"].append({
            "w": jax.random.normal(k1, (cout, cin, k, k, k), jnp.float32)
                 / jnp.sqrt(fan_in),
            "b": 0.01 * jax.random.normal(k2, (cout,), jnp.float32),
        })
        params["bn3d"].append({
            "gamma_proj": 0.1 * jax.random.normal(k3, (cout, e), jnp.float32),
            "beta_proj": 0.1 * jax.random.normal(k4, (cout, e), jnp.float32),
            "embed": jax.random.normal(k5, (e,), jnp.float32),
        })
    for (fin, fout) in FC_CFG:
        key, k1, k2 = jax.random.split(key, 3)
        params["fc"].append({
            "w": jax.random.normal(k1, (fout, fin), jnp.float32) / jnp.sqrt(fin),
            "b": 0.01 * jax.random.normal(k2, (fout,), jnp.float32),
        })
    for fout in (65, 40, 20):   # bn20, bn21, bn22 (PyTorch default affine init)
        params["bn1d"].append({"gamma": jnp.ones((fout,), jnp.float32),
                               "beta": jnp.zeros((fout,), jnp.float32)})
    return params


def forward(params, x):
    n = x.shape[0]
    # identity affine in front of the first conv (no preceding BN)
    cur_scale = jnp.ones((x.shape[1], 1), jnp.float32)
    cur_shift = jnp.zeros((x.shape[1], 1), jnp.float32)
    h = x
    for cfg, cp, bp in zip(CONV_CFG, params["conv"], params["bn3d"]):
        cin, cout, k, stride, _ = cfg
        _, _, d_in, h_in, w_in = h.shape
        plan = plan_depth_tiles(cin, d_in, h_in, w_in, k, stride)
        # BN(prev) + pad + channel-pad + depth-halo tiles (bf16)
        xt = bn_apply_pad_tiles(h, cur_scale, cur_shift, pad=plan["pad"],
                                tdp=plan["tdp"], stride=stride,
                                cdblk=plan["cdblk"], n_dt=plan["n_dt"])
        # fused conv + bias + ReLU + maxpool(2) + BN sums
        h, psum, psq = conv_relu_pool(xt, cp["w"], cp["b"], n=n,
                                      d_pool=plan["d_pool"], stride=stride,
                                      tdp=plan["tdp"], n_dt=plan["n_dt"])
        ssum = jnp.sum(psum, axis=0)    # reduce per-batch partials -> (cout, 1)
        ssq = jnp.sum(psq, axis=0)
        count = float(n * h.shape[2] * h.shape[3] * h.shape[4])
        cur_scale, cur_shift = fsc_bn3d_scale_shift(ssum, ssq, count, bp)

    # TODO(synk): Dropout3d(p=0.5) / Dropout(p=0.25) treated as inference-mode
    # identity (stochastic training-mode masking not reproduced).
    _, c_f, d_f, h_f, w_f = h.shape
    feat = h.reshape(n, -1)                                  # NCDHW flatten == torch .view
    # fold the last fsc_BN3d (per-channel affine) into fc1's per-feature scale/shift
    s19 = jnp.repeat(cur_scale[:, 0], d_f * h_f * w_f).reshape(1, -1)
    t19 = jnp.repeat(cur_shift[:, 0], d_f * h_f * w_f).reshape(1, -1)

    z = linear(feat, s19, t19, params["fc"][0]["w"], params["fc"][0]["b"], relu=True)
    s, t = bn1d_scale_shift(z, params["bn1d"][0]["gamma"], params["bn1d"][0]["beta"])
    z = linear(z, s, t, params["fc"][1]["w"], params["fc"][1]["b"], relu=True)
    s, t = bn1d_scale_shift(z, params["bn1d"][1]["gamma"], params["bn1d"][1]["beta"])
    z = linear(z, s, t, params["fc"][2]["w"], params["fc"][2]["b"], relu=True)
    s, t = bn1d_scale_shift(z, params["bn1d"][2]["gamma"], params["bn1d"][2]["beta"])
    out = linear(z, s, t, params["fc"][3]["w"], params["fc"][3]["b"], relu=False)
    return out


if __name__ == "__main__":
    key = jax.random.PRNGKey(0)
    pkey, xkey = jax.random.split(key)
    params = init_params(pkey)

    # Smallest input consistent with the module's hard-coded flatten
    # (80 * 7 * 7 * 3 = 11760): NCDHW = (2, 1, 83, 147, 147)
    # -> final conv feature map (80, 3, 7, 7).
    x = jax.random.normal(xkey, (2, 1, 83, 147, 147), jnp.float32)

    out = forward(params, x)
    out = jax.block_until_ready(out)
    assert out.shape == (2, 3), out.shape
    assert bool(jnp.all(jnp.isfinite(out)))
    print("KERNEL_OK")
</pallas_src>

<mosaic_0001>
module attributes {stable_mosaic.version = 11 : i64} {
  func.func @_prep_kernel(%arg0: i32, %arg1: i32, %arg2: i32, %arg3: memref<1x1x1x147x147xf32, #tpu.memory_space<vmem>>, %arg4: memref<1x1xf32, #tpu.memory_space<vmem>>, %arg5: memref<1x1xf32, #tpu.memory_space<vmem>>, %arg6: memref<1x8x1x151x151xbf16, #tpu.memory_space<vmem>>) attributes {dimension_semantics = [#tpu.dimension_semantics<parallel>, #tpu.dimension_semantics<parallel>, #tpu.dimension_semantics<parallel>], iteration_bounds = array<i64: 2, 7, 17>, scalar_prefetch = 0 : i64, scratch_operands = 0 : i64, tpu.core_type = #tpu.core_type<tc>, window_params = [{transform_indices = @transform_0, window_bounds = array<i64: 1, 1, 1, 147, 147>}, {pipeline_mode = #tpu.pipeline_mode<synchronous>, transform_indices = @transform_1, window_bounds = array<i64: 1, 1>}, {pipeline_mode = #tpu.pipeline_mode<synchronous>, transform_indices = @transform_2, window_bounds = array<i64: 1, 1>}, {transform_indices = @transform_3, window_bounds = array<i64: 1, 8, 1, 151, 151>}]} {
    %c12_i32 = arith.constant 12 : i32
    %0 = arith.muli %arg1, %c12_i32 : i32
    %1 = arith.addi %0, %arg2 : i32
    %c2_i32 = arith.constant 2 : i32
    %2 = arith.subi %1, %c2_i32 : i32
    %c0_i32 = arith.constant 0 : i32
    %3 = arith.cmpi sge, %2, %c0_i32 : i32
    %c83_i32 = arith.constant 83 : i32
    %4 = arith.cmpi slt, %2, %c83_i32 : i32
    %5 = arith.andi %3, %4 : i1
    %6 = arith.extui %5 : i1 to i32
    %c0_i32_0 = arith.constant 0 : i32
    %7 = arith.cmpi ne, %6, %c0_i32_0 : i32
    scf.if %7 {
      %c0 = arith.constant 0 : index
      %c0_2 = arith.constant 0 : index
      %c0_3 = arith.constant 0 : index
      %c0_4 = arith.constant 0 : index
      %c0_5 = arith.constant 0 : index
      %11 = vector.load %arg3[%c0, %c0_2, %c0_3, %c0_4, %c0_5] : memref<1x1x1x147x147xf32, #tpu.memory_space<vmem>>, vector<1x1x1x147x147xf32>
      %12 = vector.shape_cast %11 : vector<1x1x1x147x147xf32> to vector<1x147x147xf32>
      %c0_6 = arith.constant 0 : index
      %c0_7 = arith.constant 0 : index
      %13 = vector.load %arg4[%c0_6, %c0_7] : memref<1x1xf32, #tpu.memory_space<vmem>>, vector<1x1xf32>
      %c0_8 = arith.constant 0 : index
      %c0_9 = arith.constant 0 : index
      %14 = vector.load %arg5[%c0_8, %c0_9] : memref<1x1xf32, #tpu.memory_space<vmem>>, vector<1x1xf32>
      %15 = vector.shape_cast %13 : vector<1x1xf32> to vector<1x1x1xf32>
      %16 = vector.broadcast %15 : vector<1x1x1xf32> to vector<1x147x147xf32>
      %17 = arith.mulf %12, %16 : vector<1x147x147xf32>
      %18 = vector.shape_cast %14 : vector<1x1xf32> to vector<1x1x1xf32>
      %19 = vector.broadcast %18 : vector<1x1x1xf32> to vector<1x147x147xf32>
      %20 = arith.addf %17, %19 : vector<1x147x147xf32>
      %21 = arith.truncf %20 : vector<1x147x147xf32> to vector<1x147x147xbf16>
      %cst = arith.constant 0.000000e+00 : bf16
      %22 = vector.broadcast %cst : bf16 to vector<1x147x2xbf16>
      %23 = tpu.concatenate %22, %21, %22 in 2 : vector<1x147x2xbf16>, vector<1x147x147xbf16>, vector<1x147x2xbf16> -> vector<1x147x151xbf16>
      %cst_10 = arith.constant 0.000000e+00 : bf16
      %24 = vector.broadcast %cst_10 : bf16 to vector<1x2x151xbf16>
      %25 = tpu.concatenate %24, %23, %24 in 1 : vector<1x2x151xbf16>, vector<1x147x151xbf16>, vector<1x2x151xbf16> -> vector<1x151x151xbf16>
      %cst_11 = arith.constant 0.000000e+00 : bf16
      %26 = vector.broadcast %cst_11 : bf16 to vector<7x151x151xbf16>
      %27 = tpu.concatenate %25, %26 in 0 : vector<1x151x151xbf16>, vector<7x151x151xbf16> -> vector<8x151x151xbf16>
      %c0_12 = arith.constant 0 : index
      %c0_13 = arith.constant 0 : index
      %c0_14 = arith.constant 0 : index
      %c0_15 = arith.constant 0 : index
      %c0_16 = arith.constant 0 : index
      %28 = vector.load %arg6[%c0_12, %c0_13, %c0_14, %c0_15, %c0_16] : memref<1x8x1x151x151xbf16, #tpu.memory_space<vmem>>, vector<1x8x1x151x151xbf16>
      %29 = vector.shape_cast %28 : vector<1x8x1x151x151xbf16> to vector<8x151x151xbf16>
      %30 = vector.shape_cast %27 : vector<8x151x151xbf16> to vector<1x8x1x151x151xbf16>
      tpu.vector_store %arg6[%c0_12, %c0_13, %c0_14, %c0_15, %c0_16], %30 {strides = array<i32>} : memref<1x8x1x151x151xbf16, #tpu.memory_space<vmem>>, vector<1x8x1x151x151xbf16>,
    } else {
    }
    %true = arith.constant true
    %8 = arith.xori %5, %true : i1
    %9 = arith.extui %8 : i1 to i32
    %c0_i32_1 = arith.constant 0 : i32
    %10 = arith.cmpi ne, %9, %c0_i32_1 : i32
    scf.if %10 {
      %cst = arith.constant 0.000000e+00 : bf16
      %11 = vector.broadcast %cst : bf16 to vector<8x151x151xbf16>
      %c0 = arith.constant 0 : index
      %c0_2 = arith.constant 0 : index
      %c0_3 = arith.constant 0 : index
      %c0_4 = arith.constant 0 : index
      %c0_5 = arith.constant 0 : index
      %12 = vector.load %arg6[%c0, %c0_2, %c0_3, %c0_4, %c0_5] : memref<1x8x1x151x151xbf16, #tpu.memory_space<vmem>>, vector<1x8x1x151x151xbf16>
      %13 = vector.shape_cast %12 : vector<1x8x1x151x151xbf16> to vector<8x151x151xbf16>
      %14 = vector.shape_cast %11 : vector<8x151x151xbf16> to vector<1x8x1x151x151xbf16>
      tpu.vector_store %arg6[%c0, %c0_2, %c0_3, %c0_4, %c0_5], %14 {strides = array<i32>} : memref<1x8x1x151x151xbf16, #tpu.memory_space<vmem>>, vector<1x8x1x151x151xbf16>,
    } else {
    }
    return
  }
  func.func @transform_0(%arg0: i32, %arg1: i32, %arg2: i32) -> (i32, i32, i32, i32, i32) {
    %c12_i32 = arith.constant 12 : i32
    %0 = arith.muli %arg1, %c12_i32 : i32
    %1 = arith.addi %0, %arg2 : i32
    %c2_i32 = arith.constant 2 : i32
    %2 = arith.subi %1, %c2_i32 : i32
    %c0_i32 = arith.constant 0 : i32
    %c82_i32 = arith.constant 82 : i32
    %3 = arith.maxsi %c0_i32, %2 : i32
    %4 = arith.minsi %c82_i32, %3 : i32
    %c0_i32_0 = arith.constant 0 : i32
    %c0_i32_1 = arith.constant 0 : i32
    %c0_i32_2 = arith.constant 0 : i32
    %c0_i32_3 = arith.constant 0 : i32
    return %arg0, %c0_i32_0, %4, %c0_i32_1, %c0_i32_2 : i32, i32, i32, i32, i32
  }
  func.func @transform_1(%arg0: i32, %arg1: i32, %arg2: i32) -> (i32, i32) {
    %c0_i32 = arith.constant 0 : i32
    %c0_i32_0 = arith.constant 0 : i32
    %c0_i32_1 = arith.constant 0 : i32
    return %c0_i32, %c0_i32_0 : i32, i32
  }
  func.func @transform_2(%arg0: i32, %arg1: i32, %arg2: i32) -> (i32, i32) {
    %c0_i32 = arith.constant 0 : i32
    %c0_i32_0 = arith.constant 0 : i32
    %c0_i32_1 = arith.constant 0 : i32
    return %c0_i32, %c0_i32_0 : i32, i32
  }
  func.func @transform_3(%arg0: i32, %arg1: i32, %arg2: i32) -> (i32, i32, i32, i32, i32) {
    %c7_i32 = arith.constant 7 : i32
    %0 = arith.muli %arg0, %c7_i32 : i32
    %1 = arith.addi %0, %arg1 : i32
    %c0_i32 = arith.constant 0 : i32
    %c0_i32_0 = arith.constant 0 : i32
    %c0_i32_1 = arith.constant 0 : i32
    %c0_i32_2 = arith.constant 0 : i32
    return %1, %c0_i32, %arg2, %c0_i32_0, %c0_i32_1 : i32, i32, i32, i32, i32
  }
}

</mosaic_0001>

<llo_original>
// kernel: tpu_custom_call.1
$region0: #{tpu_custom_call.1}
  #allocation0 [shape = 'u32[]', space=smem, size = 0x4, offset = 0x4, fixed_abs, tag = 'smem constant byte address 0x4 - core index']
  #allocation1 [shape = 'u32[144,128]{1,0:T(1,128)}', space=vmem, size = 0x12000, scoped, tag = 'internal scratch']
  #allocation2 [shape = 'f32[1,1]{1,0:T(1,128)S(1)}', space=vmem, size = 0x200, scoped, tag = 'scoped memory for tpu_custom_call.1']
  #allocation3 [shape = 'f32[1,1]{1,0:T(1,128)S(1)}', space=vmem, size = 0x200, scoped, tag = 'scoped memory for tpu_custom_call.1']
  #allocation6 [shape = 's32[]', space=sflag, size = 0x4, offset = 0, fixed_abs, tag = 'sflag constant byte address 0x0 - dummy sync flag']
  %s0 = inlined_call_operand.vmem [shape: f32[2,1,83,147,147], index: 0, kind: input, shape index: {}]
  %s1 = inlined_call_operand.<no memory space> [shape: f32[1,1], index: 1, kind: input, shape index: {}]
  %s2 = inlined_call_operand.<no memory space> [shape: f32[1,1], index: 2, kind: input, shape index: {}]
  %s3 = inlined_call_operand.hbm [shape: bf16[14,8,17,151,151], index: 3, kind: output, shape index: {}]
  %s4 = sld [smem:[#allocation0]]
  $region53: #{tpu_custom_call.1} parent=0
    _
  %s6 = ssub.s32 1, %s4
  %s7 = scalar_select 0, %s6, %s4
  %v8 = vstv %s1
  %9 = vst [vmem:[#allocation2] sm:$0x1] %v8
  %v10 = vstv %s2
  %11 = vst [vmem:[#allocation3] sm:$0x1] %v10
  $region1: #{tpu_custom_call.1} parent=0
    #allocation4 [shape = 'u8[1245184]{0}', space=vmem, size = 0x130000, scoped, tag = 'output window, operand 0']
    #allocation5 [shape = 's32[2]{0}', space=sflag, size = 0x8, scoped, tag = 'scoped memory for tpu_custom_call.1']
    %12 = vsyncpa [#allocation5], 0
    %s13 = scalar_lea.sflag [#allocation5], 1
    %14 = vsyncpa %s13, 0
    loop: start=0, step=1, limit=240
    $region2: #{tpu_custom_call.1} parent=1 // loop_pre_header
      _
    $region3: #{tpu_custom_call.1} parent=1 // loop_header
      %s16 = sphi 0, %s20
      %p17 = scmp.ge.s32.totalorder %s16, 240
      %s23 = sphi 0, %s42
      %s24 = sphi 0, %s38
      %s25 = sphi 0, %s34
      %s26 = sphi 0, %s23
      %s27 = sphi 0, %s24
      %s28 = sphi 0, %s25
      %s29 = sphi 0, %s26
      %s30 = sphi 0, %s27
      %s31 = sphi 0, %s28
      %s61 = sphi 0, %s63
      %s64 = sphi 0, %s61
      %s65 = sphi 0, %s64
      %s81 = sphi 0, %s65
      %s85 = sphi 0, %s85
      %s87 = sphi 0, %s85
      %s88 = sphi 0, %s87
      %s102 = sphi 0, %s88
      %s106 = sphi 0, %s106
      %s108 = sphi 0, %s106
      %s109 = sphi 0, %s108
      %s123 = sphi 0, %s109
      %s135 = sphi 0, %s137
      %s138 = sphi 0, %s135
      %s139 = sphi 0, %s138
      %s155 = sphi 0, %s139
    $region4: #{tpu_custom_call.1} parent=1 // loop_header_branch
      %19 = sbr.rel (%p17) target = $region8
    $region5: #{tpu_custom_call.1} parent=1 // loop_body
      %s21 = ssub.s32 %s16, 1
      %s22 = ssub.s32 %s16, 2
      %s32 = sadd.s32 1, %s25
      %p33 = scmp.ge.s32.totalorder %s32, 17
      %s34 = scalar_select %p33, 0, %s32
      %s35 = sadd.s32 1, %s24
      %s36 = scalar_select %p33, %s35, %s24
      %p37 = scmp.ge.s32.totalorder %s36, 7
      %s38 = scalar_select %p37, 0, %s36
      %s39 = sadd.s32 1, %s23
      %s40 = scalar_select %p37, %s39, %s23
      %p41 = scmp.ge.s32.totalorder %s40, 2
      %s42 = scalar_select %p41, 0, %s40
      %s43 = smul.u32 %s24, 12
      %s44 = sadd.s32 %s43, %s25
      %s45 = ssub.s32 %s44, 2
      %p46 = scmp.gt.s32.totalorder %s45, 0
      %s47 = scalar_select %p46, %s45, 0
      %p48 = scmp.lt.s32.totalorder %s47, 82
      %s49 = scalar_select %p48, %s47, 82
      %s50 = smul.u32 %s38, 12
      %s51 = sadd.s32 %s50, %s34
      %s52 = ssub.s32 %s51, 2
      %p53 = scmp.gt.s32.totalorder %s52, 0
      %s54 = scalar_select %p53, %s52, 0
      %p55 = scmp.lt.s32.totalorder %s54, 82
      %s56 = scalar_select %p55, %s54, 82
      %s57 = ssub.s32 %s23, %s42
      %s58 = ssub.s32 %s49, %s56
      %s59 = sor.u32 %s57, %s58
      %p60 = scmp.eq.s32.totalorder %s59, 0
      %s62 = sadd.s32 %s61, 1
      %s63 = scalar_select %p60, %s61, %s62
      %p66 = pneg %p60
      %p67 = scmp.eq.s32.totalorder %s16, 237
      %p68 = por %p66, %p67
      %p69 = scmp.ne.s32.totalorder %s61, %s64
      %p70 = scmp.eq.s32.totalorder %s16, 0
      %p71 = por %p69, %p70
      %p72 = scmp.ne.s32.totalorder %s61, %s64
      %p73 = scmp.eq.s32.totalorder %s21, 237
      %p74 = por %p72, %p73
      %p75 = scmp.ne.s32.totalorder %s64, %s65
      %p76 = scmp.eq.s32.totalorder %s21, 0
      %p77 = por %p75, %p76
      %p78 = scmp.ne.s32.totalorder %s64, %s65
      %p79 = scmp.eq.s32.totalorder %s22, 237
      %p80 = por %p78, %p79
      %p82 = scmp.ne.s32.totalorder %s65, %s81
      %p83 = scmp.eq.s32.totalorder %s22, 0
      %p84 = por %p82, %p83
      %s86 = sadd.s32 %s85, 1
      %p89 = scmp.eq.s32.totalorder %s16, 237
      %p90 = scmp.ne.s32.totalorder %s85, %s87
      %p91 = scmp.eq.s32.totalorder %s16, 0
      %p92 = por %p90, %p91
      %p93 = scmp.ne.s32.totalorder %s85, %s87
      %p94 = scmp.eq.s32.totalorder %s21, 237
      %p95 = por %p93, %p94
      %p96 = scmp.ne.s32.totalorder %s87, %s88
      %p97 = scmp.eq.s32.totalorder %s21, 0
      %p98 = por %p96, %p97
      %p99 = scmp.ne.s32.totalorder %s87, %s88
      %p100 = scmp.eq.s32.totalorder %s22, 237
      %p101 = por %p99, %p100
      %p103 = scmp.ne.s32.totalorder %s88, %s102
      %p104 = scmp.eq.s32.totalorder %s22, 0
      %p105 = por %p103, %p104
      %s107 = sadd.s32 %s106, 1
      %p110 = scmp.eq.s32.totalorder %s16, 237
      %p111 = scmp.ne.s32.totalorder %s106, %s108
      %p112 = scmp.eq.s32.totalorder %s16, 0
      %p113 = por %p111, %p112
      %p114 = scmp.ne.s32.totalorder %s106, %s108
      %p115 = scmp.eq.s32.totalorder %s21, 237
      %p116 = por %p114, %p115
      %p117 = scmp.ne.s32.totalorder %s108, %s109
      %p118 = scmp.eq.s32.totalorder %s21, 0
      %p119 = por %p117, %p118
      %p120 = scmp.ne.s32.totalorder %s108, %s109
      %p121 = scmp.eq.s32.totalorder %s22, 237
      %p122 = por %p120, %p121
      %p124 = scmp.ne.s32.totalorder %s109, %s123
      %p125 = scmp.eq.s32.totalorder %s22, 0
      %p126 = por %p124, %p125
      %s127 = smul.u32 %s23, 7
      %s128 = sadd.s32 %s127, %s24
      %s129 = smul.u32 %s42, 7
      %s130 = sadd.s32 %s129, %s38
      %s131 = ssub.s32 %s128, %s130
      %s132 = ssub.s32 %s25, %s34
      %s133 = sor.u32 %s131, %s132
      %p134 = scmp.eq.s32.totalorder %s133, 0
      %s136 = sadd.s32 %s135, 1
      %s137 = scalar_select %p134, %s135, %s136
      %p140 = pneg %p134
      %p141 = scmp.eq.s32.totalorder %s16, 237
      %p142 = por %p140, %p141
      %p143 = scmp.ne.s32.totalorder %s135, %s138
      %p144 = scmp.eq.s32.totalorder %s16, 0
      %p145 = por %p143, %p144
      %p146 = scmp.ne.s32.totalorder %s135, %s138
      %p147 = scmp.eq.s32.totalorder %s21, 237
      %p148 = por %p146, %p147
      %p149 = scmp.ne.s32.totalorder %s138, %s139
      %p150 = scmp.eq.s32.totalorder %s21, 0
      %p151 = por %p149, %p150
      %p152 = scmp.ne.s32.totalorder %s138, %s139
      %p153 = scmp.eq.s32.totalorder %s22, 237
      %p154 = por %p152, %p153
      %p156 = scmp.ne.s32.totalorder %s139, %s155
      %p157 = scmp.eq.s32.totalorder %s22, 0
      %p158 = por %p156, %p157
      %p159 = scmp.le.s32.totalorder 1, %s16
      %p160 = scmp.lt.s32.totalorder %s16, 239
      %p161 = pnand %p159, %p160
      %p162 = pneg %p161
      // Predicated region
      $region9: #{tpu_custom_call.1} parent=5 // pred_check
        _
      $region10: #{tpu_custom_call.1} parent=5 // pred_check_branch
        %164 = sbr.rel (%p161) target = $region12
      $region11: #{tpu_custom_call.1} parent=5 // pred_region
        %s165 = ssub.s32 %s16, 1
        // Predicated region
        $region13: #{tpu_custom_call.1} parent=11 // pred_check
          %p166 = pneg %p98
        $region14: #{tpu_custom_call.1} parent=11 // pred_check_branch
          %168 = sbr.rel (%p166) target = $region16
        $region15: #{tpu_custom_call.1} parent=11 // pred_region
          _
        $region16: #{tpu_custom_call.1} parent=11 // pred_fallthru
          _
        // Predicated region
        $region17: #{tpu_custom_call.1} parent=11 // pred_check
          %p169 = pneg %p119
        $region18: #{tpu_custom_call.1} parent=11 // pred_check_branch
          %171 = sbr.rel (%p169) target = $region20
        $region19: #{tpu_custom_call.1} parent=11 // pred_region
          _
        $region20: #{tpu_custom_call.1} parent=11 // pred_fallthru
          _
      $region12: #{tpu_custom_call.1} parent=5 // pred_fallthru
        _
      %p172 = scmp.lt.s32.totalorder %s16, 238
      // Predicated region
      $region21: #{tpu_custom_call.1} parent=5 // pred_check
        %p173 = pneg %p172
      $region22: #{tpu_custom_call.1} parent=5 // pred_check_branch
        %175 = sbr.rel (%p173) target = $region24
      $region23: #{tpu_custom_call.1} parent=5 // pred_region
        // Predicated region
        $region25: #{tpu_custom_call.1} parent=23 // pred_check
          %p176 = pneg %p71
        $region26: #{tpu_custom_call.1} parent=23 // pred_check_branch
          %178 = sbr.rel (%p176) target = $region28
        $region27: #{tpu_custom_call.1} parent=23 // pred_region
          %s179 = smul.u32 %s24, 12
          %s180 = sadd.s32 %s179, %s25
          %s181 = ssub.s32 %s180, 2
          %p182 = scmp.gt.s32.totalorder %s181, 0
          %s183 = scalar_select %p182, %s181, 0
          %p184 = scmp.lt.s32.totalorder %s183, 82
          %s185 = scalar_select %p184, %s183, 82
          %p186 = scmp.lt.s32.totalorder %s23, 1
          %s187 = scalar_select %p186, %s23, 1
          %p188 = scmp.lt.s32.totalorder %s185, 82
          %s189 = scalar_select %p188, %s185, 82
          %s190 = smul.addr %s189, 38
          %s191 = smul.addr %s187, 3154
          %s192 = sadd.s32 %s190, %s191
          %s193 = smul.addr %s192, 8
          %s194 = scalar_lea.vmem %s0, %s193
          %s195 = smul.u32 %s24, 12
          %s196 = sadd.s32 %s195, %s25
          %s197 = ssub.s32 %s196, 2
          %p198 = scmp.gt.s32.totalorder %s197, 0
          %s199 = scalar_select %p198, %s197, 0
          %p200 = scmp.lt.s32.totalorder %s199, 82
          %s201 = scalar_select %p200, %s199, 82
        $region28: #{tpu_custom_call.1} parent=23 // pred_fallthru
          _
      $region24: #{tpu_custom_call.1} parent=5 // pred_fallthru
        _
      %p202 = scmp.le.s32.totalorder 1, %s16
      %p203 = scmp.lt.s32.totalorder %s16, 239
      %p204 = pnand %p202, %p203
      %p205 = pneg %p204
      // Predicated region
      $region29: #{tpu_custom_call.1} parent=5 // pred_check
        _
      $region30: #{tpu_custom_call.1} parent=5 // pred_check_branch
        %207 = sbr.rel (%p204) target = $region32
      $region31: #{tpu_custom_call.1} parent=5 // pred_region
        %s208 = ssub.s32 %s16, 1
        %s209 = smul.u32 %s27, 12
        %s210 = sadd.s32 %s209, %s28
        %s211 = ssub.s32 %s210, 2
        %p212 = scmp.gt.s32.totalorder %s211, 0
        %s213 = scalar_select %p212, %s211, 0
        %p214 = scmp.lt.s32.totalorder %s213, 82
        %s215 = scalar_select %p214, %s213, 82
        %p216 = scmp.lt.s32.totalorder %s26, 1
        %s217 = scalar_select %p216, %s26, 1
        %p218 = scmp.lt.s32.totalorder %s215, 82
        %s219 = scalar_select %p218, %s215, 82
        %s220 = smul.addr %s219, 38
        %s221 = smul.addr %s217, 3154
        %s222 = sadd.s32 %s220, %s221
        %s223 = smul.addr %s222, 8
        %s224 = scalar_lea.vmem %s0, %s223
        %p225 = pneg %p77
        %p226 = pneg %p74
        %p227 = pneg %p98
        %p228 = pneg %p95
        %p229 = pneg %p119
        %p230 = pneg %p116
        %p231 = pneg %p151
        %p232 = pneg %p148
        %s233 = sand.u32 %s138, 1
        %s234 = scalar_lea.sflag [#allocation5], %s233
        %s235 = sand.u32 %s138, 1
        %s236 = smul.addr %s235, 1216
        %s237 = scalar_lea.vmem [#allocation4], %s236
        %s238 = smul.u32 %s27, 12
        %s239 = sadd.s32 %s238, %s28
        %s240 = ssub.s32 %s239, 2
        %p241 = scmp.gt.s32.totalorder %s240, 0
        %s242 = scalar_select %p241, %s240, 0
        %p243 = scmp.lt.s32.totalorder %s242, 82
        %s244 = scalar_select %p243, %s242, 82
        %p245 = scmp.lt.s32.totalorder %s26, 1
        %s246 = scalar_select %p245, %s26, 1
        %p247 = scmp.lt.s32.totalorder %s244, 82
        %s248 = scalar_select %p247, %s244, 82
        %s249 = smul.addr %s248, 38
        %s250 = smul.addr %s246, 3154
        %s251 = sadd.s32 %s249, %s250
        %s252 = smul.addr %s251, 8
        %s253 = scalar_lea.vmem %s0, %s252
        %s254 = smul.u32 %s27, 12
        %s255 = sadd.s32 %s254, %s28
        %s256 = ssub.s32 %s255, 2
        %p257 = scmp.gt.s32.totalorder %s256, 0
        %s258 = scalar_select %p257, %s256, 0
        %p259 = scmp.lt.s32.totalorder %s258, 82
        %s260 = scalar_select %p259, %s258, 82
        %s261 = smul.u32 %s26, 7
        %s262 = sadd.s32 %s261, %s27
        %s264 = smul.u32 %s27, 12
        %s265 = sadd.s32 %s264, %s28
        %s266 = ssub.s32 %s265, 2
        %p267 = scmp.ge.s32.totalorder %s266, 0
        %p268 = scmp.lt.s32.totalorder %s266, 83
        %p269 = pnand %p267, %p268
        %p270 = pneg %p269
        // Predicated region
        $region33: #{tpu_custom_call.1} parent=31 // pred_check
          _
        $region34: #{tpu_custom_call.1} parent=31 // pred_check_branch
          %272 = sbr.rel (%p269) target = $region36
        $region35: #{tpu_custom_call.1} parent=31 // pred_region
          %v273 = vld [vmem:[%s253] sm:$0xff]
          %v274 = vld [vmem:[%s253 + $0x8] sm:$0xff]
          %v275 = vld [vmem:[%s253 + $0x10] sm:$0xff]
          %v276 = vld [vmem:[%s253 + $0x18] sm:$0xff]
          %v277 = vld [vmem:[%s253 + $0x20] sm:$0xff]
          %v278 = vld [vmem:[%s253 + $0x28] sm:$0xff]
          %v279 = vld [vmem:[%s253 + $0x30] sm:$0xff]
          %v280 = vld [vmem:[%s253 + $0x38] sm:$0xff]
          %v281 = vld [vmem:[%s253 + $0x40] sm:$0xff]
          %v282 = vld [vmem:[%s253 + $0x48] sm:$0xff]
          %v283 = vld [vmem:[%s253 + $0x50] sm:$0xff]
          %v284 = vld [vmem:[%s253 + $0x58] sm:$0xff]
          %v285 = vld [vmem:[%s253 + $0x60] sm:$0xff]
          %v286 = vld [vmem:[%s253 + $0x68] sm:$0xff]
          %v287 = vld [vmem:[%s253 + $0x70] sm:$0xff]
          %v288 = vld [vmem:[%s253 + $0x78] sm:$0xff]
          %v289 = vld [vmem:[%s253 + $0x80] sm:$0xff]
          %v290 = vld [vmem:[%s253 + $0x88] sm:$0xff]
          %v291 = vld [vmem:[%s253 + $0x90] sm:$0xff]
          %v292 = vld [vmem:[%s253 + $0x98] sm:$0xff]
          %v293 = vld [vmem:[%s253 + $0xa0] sm:$0xff]
          %v294 = vld [vmem:[%s253 + $0xa8] sm:$0xff]
          %v295 = vld [vmem:[%s253 + $0xb0] sm:$0xff]
          %v296 = vld [vmem:[%s253 + $0xb8] sm:$0xff]
          %v297 = vld [vmem:[%s253 + $0xc0] sm:$0xff]
          %v298 = vld [vmem:[%s253 + $0xc8] sm:$0xff]
          %v299 = vld [vmem:[%s253 + $0xd0] sm:$0xff]
          %v300 = vld [vmem:[%s253 + $0xd8] sm:$0xff]
          %v301 = vld [vmem:[%s253 + $0xe0] sm:$0xff]
          %v302 = vld [vmem:[%s253 + $0xe8] sm:$0xff]
          %v303 = vld [vmem:[%s253 + $0xf0] sm:$0xff]
          %v304 = vld [vmem:[%s253 + $0xf8] sm:$0xff]
          %v305 = vld [vmem:[%s253 + $0x100] sm:$0xff]
          %v306 = vld [vmem:[%s253 + $0x108] sm:$0xff]
          %v307 = vld [vmem:[%s253 + $0x110] sm:$0xff]
          %v308 = vld [vmem:[%s253 + $0x118] sm:$0xff]
          %v309 = vld [vmem:[%s253 + $0x120] sm:$0x7]
          %v310 = vld [vmem:[%s253 + $0x128] sm:$0x7]
          %v311 = vld [vmem:[#allocation2] sm:$0x1]
          %v312 = vld [vmem:[#allocation3] sm:$0x1]
          %v314 = vlaneseq
          %v315 = vshrl.u32 %v314, 7
          %v316 = vsub.s32 0, %v315
          %v317 = vrot.slane %v311, %v316
          %318 = vset.pattern.permute.xlu0 0
          %319 = vperm.xlu0 %318, %v317
          %v320 = vpop.permute.xlu0 %319
          %v322 = vmul.f32 %v273, %v320
          %v323 = vmul.f32 %v274, %v320
          %v324 = vmul.f32 %v275, %v320
          %v325 = vmul.f32 %v276, %v320
          %v326 = vmul.f32 %v277, %v320
          %v327 = vmul.f32 %v278, %v320
          %v328 = vmul.f32 %v279, %v320
          %v329 = vmul.f32 %v280, %v320
          %v330 = vmul.f32 %v281, %v320
          %v331 = vmul.f32 %v282, %v320
          %v332 = vmul.f32 %v283, %v320
          %v333 = vmul.f32 %v284, %v320
          %v334 = vmul.f32 %v285, %v320
          %v335 = vmul.f32 %v286, %v320
          %v336 = vmul.f32 %v287, %v320
          %v337 = vmul.f32 %v288, %v320
          %v338 = vmul.f32 %v289, %v320
          %v339 = vmul.f32 %v290, %v320
          %v340 = vmul.f32 %v291, %v320
          %v341 = vmul.f32 %v292, %v320
          %v342 = vmul.f32 %v293, %v320
          %v343 = vmul.f32 %v294, %v320
          %v344 = vmul.f32 %v295, %v320
          %v345 = vmul.f32 %v296, %v320
          %v346 = vmul.f32 %v297, %v320
          %v347 = vmul.f32 %v298, %v320
          %v348 = vmul.f32 %v299, %v320
          %v349 = vmul.f32 %v300, %v320
          %v350 = vmul.f32 %v301, %v320
          %v351 = vmul.f32 %v302, %v320
          %v352 = vmul.f32 %v303, %v320
          %v353 = vmul.f32 %v304, %v320
          %v354 = vmul.f32 %v305, %v320
          %v355 = vmul.f32 %v306, %v320
          %v356 = vmul.f32 %v307, %v320
          %v357 = vmul.f32 %v308, %v320
          %v358 = vmul.f32 %v309, %v320
          %v359 = vmul.f32 %v310, %v320
          %v361 = vlaneseq
          %v362 = vshrl.u32 %v361, 7
          %v363 = vsub.s32 0, %v362
          %v364 = vrot.slane %v312, %v363
          %365 = vset.pattern.permute.xlu0 0
          %366 = vperm.xlu0 %365, %v364
          %v367 = vpop.permute.xlu0 %366
          %v369 = vadd.f32 %v322, %v367
          %v370 = vadd.f32 %v323, %v367
          %v371 = vadd.f32 %v324, %v367
          %v372 = vadd.f32 %v325, %v367
          %v373 = vadd.f32 %v326, %v367
          %v374 = vadd.f32 %v327, %v367
          %v375 = vadd.f32 %v328, %v367
          %v376 = vadd.f32 %v329, %v367
          %v377 = vadd.f32 %v330, %v367
          %v378 = vadd.f32 %v331, %v367
          %v379 = vadd.f32 %v332, %v367
          %v380 = vadd.f32 %v333, %v367
          %v381 = vadd.f32 %v334, %v367
          %v382 = vadd.f32 %v335, %v367
          %v383 = vadd.f32 %v336, %v367
          %v384 = vadd.f32 %v337, %v367
          %v385 = vadd.f32 %v338, %v367
          %v386 = vadd.f32 %v339, %v367
          %v387 = vadd.f32 %v340, %v367
          %v388 = vadd.f32 %v341, %v367
          %v389 = vadd.f32 %v342, %v367
          %v390 = vadd.f32 %v343, %v367
          %v391 = vadd.f32 %v344, %v367
          %v392 = vadd.f32 %v345, %v367
          %v393 = vadd.f32 %v346, %v367
          %v394 = vadd.f32 %v347, %v367
          %v395 = vadd.f32 %v348, %v367
          %v396 = vadd.f32 %v349, %v367
          %v397 = vadd.f32 %v350, %v367
          %v398 = vadd.f32 %v351, %v367
          %v399 = vadd.f32 %v352, %v367
          %v400 = vadd.f32 %v353, %v367
          %v401 = vadd.f32 %v354, %v367
          %v402 = vadd.f32 %v355, %v367
          %v403 = vadd.f32 %v356, %v367
          %v404 = vadd.f32 %v357, %v367
          %v405 = vadd.f32 %v358, %v367
          %v406 = vadd.f32 %v359, %v367
          %v407 = vpack.c.bf16 %v371, %v369
          %v408 = vpack.c.bf16 %v372, %v370
          %v409 = vpack.c.bf16 %v375, %v373
          %v410 = vpack.c.bf16 %v376, %v374
          %v411 = vpack.c.bf16 %v379, %v377
          %v412 = vpack.c.bf16 %v380, %v378
          %v413 = vpack.c.bf16 %v383, %v381
          %v414 = vpack.c.bf16 %v384, %v382
          %v415 = vpack.c.bf16 %v387, %v385
          %v416 = vpack.c.bf16 %v388, %v386
          %v417 = vpack.c.bf16 %v391, %v389
          %v418 = vpack.c.bf16 %v392, %v390
          %v419 = vpack.c.bf16 %v395, %v393
          %v420 = vpack.c.bf16 %v396, %v394
          %v421 = vpack.c.bf16 %v399, %v397
          %v422 = vpack.c.bf16 %v400, %v398
          %v423 = vpack.c.bf16 %v403, %v401
          %v424 = vpack.c.bf16 %v404, %v402
          %v425 = vpack.c.bf16 %v405, %v405
          %v426 = vpack.c.bf16 %v406, %v406
          %447 = vrot.lane.b32.xlu0 %v407, 2
          %v448 = vpop.permute.xlu0 %447
          %449 = vrot.lane.b32.xlu0 %v408, 2
          %v450 = vpop.permute.xlu0 %449
          %451 = vrot.lane.b32.xlu0 %v409, 2
          %v452 = vpop.permute.xlu0 %451
          %453 = vrot.lane.b32.xlu0 %v410, 2
          %v454 = vpop.permute.xlu0 %453
          %455 = vrot.lane.b32.xlu0 %v411, 2
          %v456 = vpop.permute.xlu0 %455
          %457 = vrot.lane.b32.xlu0 %v412, 2
          %v458 = vpop.permute.xlu0 %457
          %459 = vrot.lane.b32.xlu0 %v413, 2
          %v460 = vpop.permute.xlu0 %459
          %461 = vrot.lane.b32.xlu0 %v414, 2
          %v462 = vpop.permute.xlu0 %461
          %463 = vrot.lane.b32.xlu0 %v415, 2
          %v464 = vpop.permute.xlu0 %463
          %465 = vrot.lane.b32.xlu0 %v416, 2
          %v466 = vpop.permute.xlu0 %465
          %467 = vrot.lane.b32.xlu0 %v417, 2
          %v468 = vpop.permute.xlu0 %467
          %469 = vrot.lane.b32.xlu0 %v418, 2
          %v470 = vpop.permute.xlu0 %469
          %471 = vrot.lane.b32.xlu0 %v419, 2
          %v472 = vpop.permute.xlu0 %471
          %473 = vrot.lane.b32.xlu0 %v420, 2
          %v474 = vpop.permute.xlu0 %473
          %475 = vrot.lane.b32.xlu0 %v421, 2
          %v476 = vpop.permute.xlu0 %475
          %477 = vrot.lane.b32.xlu0 %v422, 2
          %v478 = vpop.permute.xlu0 %477
          %479 = vrot.lane.b32.xlu0 %v423, 2
          %v480 = vpop.permute.xlu0 %479
          %481 = vrot.lane.b32.xlu0 %v424, 2
          %v482 = vpop.permute.xlu0 %481
          %483 = vrot.lane.b32.xlu0 %v425, 2
          %v484 = vpop.permute.xlu0 %483
          %485 = vrot.lane.b32.xlu0 %v426, 2
          %v486 = vpop.permute.xlu0 %485
          %vm487 = vcmask 15360
          %v488 = vsel %vm487, %v448, %v450
          %v489 = vsel %vm487, %v452, %v454
          %v490 = vsel %vm487, %v456, %v458
          %v491 = vsel %vm487, %v460, %v462
          %v492 = vsel %vm487, %v464, %v466
          %v493 = vsel %vm487, %v468, %v470
          %v494 = vsel %vm487, %v472, %v474
          %v495 = vsel %vm487, %v476, %v478
          %v496 = vsel %vm487, %v480, %v482
          %v497 = vsel %vm487, %v484, %v486
          %vm498 = vcmask 15360
          %v501 = vsel %vm498, 0, %v448
          %v503 = vsel %vm498, 0, %v452
          %v505 = vsel %vm498, 0, %v456
          %v507 = vsel %vm498, 0, %v460
          %v509 = vsel %vm498, 0, %v464
          %v511 = vsel %vm498, 0, %v468
          %v513 = vsel %vm498, 0, %v472
          %v515 = vsel %vm498, 0, %v476
          %v517 = vsel %vm498, 0, %v480
          %v519 = vsel %vm498, 0, %v484
          %vm520 = vcmask 171008
          %v522 = vsel %vm520, %v488, 0
          %v524 = vsel %vm520, %v489, 0
          %v526 = vsel %vm520, %v490, 0
          %v528 = vsel %vm520, %v491, 0
          %v530 = vsel %vm520, %v492, 0
          %v532 = vsel %vm520, %v493, 0
          %v534 = vsel %vm520, %v494, 0
          %v536 = vsel %vm520, %v495, 0
          %v538 = vsel %vm520, %v496, 0
          %v540 = vsel %vm520, %v497, 0
          %vm561 = vcmask 1040384
          %v562 = vrot.slane %v501, 7
          %v563 = vrot.slane %v522, 7
          %v564 = vrot.slane %v503, 7
          %v565 = vsel %vm561, %v562, %v564
          %v566 = vrot.slane %v524, 7
          %v567 = vsel %vm561, %v563, %v566
          %v568 = vrot.slane %v505, 7
          %v569 = vsel %vm561, %v564, %v568
          %v570 = vrot.slane %v526, 7
          %v571 = vsel %vm561, %v566, %v570
          %v572 = vrot.slane %v507, 7
          %v573 = vsel %vm561, %v568, %v572
          %v574 = vrot.slane %v528, 7
          %v575 = vsel %vm561, %v570, %v574
          %v576 = vrot.slane %v509, 7
          %v577 = vsel %vm561, %v572, %v576
          %v578 = vrot.slane %v530, 7
          %v579 = vsel %vm561, %v574, %v578
          %v580 = vrot.slane %v511, 7
          %v581 = vsel %vm561, %v576, %v580
          %v582 = vrot.slane %v532, 7
          %v583 = vsel %vm561, %v578, %v582
          %v584 = vrot.slane %v513, 7
          %v585 = vsel %vm561, %v580, %v584
          %v586 = vrot.slane %v534, 7
          %v587 = vsel %vm561, %v582, %v586
          %v588 = vrot.slane %v515, 7
          %v589 = vsel %vm561, %v584, %v588
          %v590 = vrot.slane %v536, 7
          %v591 = vsel %vm561, %v586, %v590
          %v592 = vrot.slane %v517, 7
          %v593 = vsel %vm561, %v588, %v592
          %v594 = vrot.slane %v538, 7
          %v595 = vsel %vm561, %v590, %v594
          %v596 = vrot.slane %v519, 7
          %v597 = vsel %vm561, %v592, %v596
          %v598 = vrot.slane %v540, 7
          %v599 = vsel %vm561, %v594, %v598
          %vm602 = vcmask 1040384
          %v604 = vsel %vm602, 0, %v562
          %v606 = vsel %vm602, 0, %v563
          %vm607 = vcmask 1042432
          %vm608 = vsmask.f32 2304
          %vm609 = vmand %vm607, %vm608
          %v610 = vsel %vm609, %v597, 0
          %v611 = vsel %vm609, %v599, 0
          %v617 = vunpack.c.l.b16 %v604
          %v618 = vunpack.c.l.b16 %v606
          %v619 = vunpack.c.h.b16 %v604
          %v620 = vunpack.c.h.b16 %v606
          %v621 = vunpack.c.l.b16 %v565
          %v622 = vunpack.c.l.b16 %v567
          %v623 = vunpack.c.h.b16 %v565
          %v624 = vunpack.c.h.b16 %v567
          %v625 = vunpack.c.l.b16 %v569
          %v626 = vunpack.c.l.b16 %v571
          %v627 = vunpack.c.h.b16 %v569
          %v628 = vunpack.c.h.b16 %v571
          %v629 = vunpack.c.l.b16 %v573
          %v630 = vunpack.c.l.b16 %v575
          %v631 = vunpack.c.h.b16 %v573
          %v632 = vunpack.c.h.b16 %v575
          %v633 = vunpack.c.l.b16 %v577
          %v634 = vunpack.c.l.b16 %v579
          %v635 = vunpack.c.h.b16 %v577
          %v636 = vunpack.c.h.b16 %v579
          %v637 = vunpack.c.l.b16 %v581
          %v638 = vunpack.c.l.b16 %v583
          %v639 = vunpack.c.h.b16 %v581
          %v640 = vunpack.c.h.b16 %v583
          %v641 = vunpack.c.l.b16 %v585
          %v642 = vunpack.c.l.b16 %v587
          %v643 = vunpack.c.h.b16 %v585
          %v644 = vunpack.c.h.b16 %v587
          %v645 = vunpack.c.l.b16 %v589
          %v646 = vunpack.c.l.b16 %v591
          %v647 = vunpack.c.h.b16 %v589
          %v648 = vunpack.c.h.b16 %v591
          %v649 = vunpack.c.l.b16 %v593
          %v650 = vunpack.c.l.b16 %v595
          %v651 = vunpack.c.h.b16 %v593
          %v652 = vunpack.c.h.b16 %v595
          %v653 = vunpack.c.l.b16 %v610
          %v654 = vunpack.c.l.b16 %v611
          %v655 = vunpack.c.l.b16 0
          %v656 = vunpack.c.h.b16 0
          %v657 = vpack.c.b16 %v618, %v617
          %v658 = vpack.c.b16 %v620, %v619
          %v659 = vpack.c.b16 %v622, %v621
          %v660 = vpack.c.b16 %v624, %v623
          %v661 = vpack.c.b16 %v626, %v625
          %v662 = vpack.c.b16 %v628, %v627
          %v663 = vpack.c.b16 %v630, %v629
          %v664 = vpack.c.b16 %v632, %v631
          %v665 = vpack.c.b16 %v634, %v633
          %v666 = vpack.c.b16 %v636, %v635
          %v667 = vpack.c.b16 %v638, %v637
          %v668 = vpack.c.b16 %v640, %v639
          %v669 = vpack.c.b16 %v642, %v641
          %v670 = vpack.c.b16 %v644, %v643
          %v671 = vpack.c.b16 %v646, %v645
          %v672 = vpack.c.b16 %v648, %v647
          %v673 = vpack.c.b16 %v650, %v649
          %v674 = vpack.c.b16 %v652, %v651
          %v675 = vpack.c.b16 %v654, %v653
          %v676 = vpack.c.b16 %v655, %v655
          %v677 = vpack.c.b16 %v656, %v656
          %vm699 = vcmask 1043456
          %vm700 = vcmask 187396
          %vm701 = vmor %vm700, %vm699
          %702 = vst.msk [vmem:[%s237] sm:$0xff] %vm701, %v657
          %703 = vst.msk [vmem:[%s237 + $0x8] sm:$0xff] %vm701, %v658
          %704 = vst.msk [vmem:[%s237 + $0x10] sm:$0xff] %vm701, %v659
          %705 = vst.msk [vmem:[%s237 + $0x18] sm:$0xff] %vm701, %v660
          %706 = vst.msk [vmem:[%s237 + $0x20] sm:$0xff] %vm701, %v661
          %707 = vst.msk [vmem:[%s237 + $0x28] sm:$0xff] %vm701, %v662
          %708 = vst.msk [vmem:[%s237 + $0x30] sm:$0xff] %vm701, %v663
          %709 = vst.msk [vmem:[%s237 + $0x38] sm:$0xff] %vm701, %v664
          %710 = vst.msk [vmem:[%s237 + $0x40] sm:$0xff] %vm701, %v665
          %711 = vst.msk [vmem:[%s237 + $0x48] sm:$0xff] %vm701, %v666
          %712 = vst.msk [vmem:[%s237 + $0x50] sm:$0xff] %vm701, %v667
          %713 = vst.msk [vmem:[%s237 + $0x58] sm:$0xff] %vm701, %v668
          %714 = vst.msk [vmem:[%s237 + $0x60] sm:$0xff] %vm701, %v669
          %715 = vst.msk [vmem:[%s237 + $0x68] sm:$0xff] %vm701, %v670
          %716 = vst.msk [vmem:[%s237 + $0x70] sm:$0xff] %vm701, %v671
          %717 = vst.msk [vmem:[%s237 + $0x78] sm:$0xff] %vm701, %v672
          %718 = vst.msk [vmem:[%s237 + $0x80] sm:$0xff] %vm701, %v673
          %719 = vst.msk [vmem:[%s237 + $0x88] sm:$0xff] %vm701, %v674
          %vm720 = vcmask 1043456
          %vm721 = vsmask.f32 3328
          %vm722 = vmand %vm720, %vm721
          %vm723 = vcmask 187396
          %vm724 = vsmask.f32 7424
          %vm725 = vmand %vm723, %vm724
          %vm726 = vmor %vm725, %vm722
          %v727 = vld [vmem:[%s237 + $0x90] sm:$0xff]
          %v728 = vsel %vm726, %v675, %v727
          %729 = vst [vmem:[%s237 + $0x90] sm:$0xff] %v728
          %730 = vst.msk [vmem:[%s237 + $0x98] sm:$0xff] %vm701, %v676
          %731 = vst.msk [vmem:[%s237 + $0xa0] sm:$0xff] %vm701, %v677
          %732 = vst.msk [vmem:[%s237 + $0xa8] sm:$0xff] %vm701, %v676
          %733 = vst.msk [vmem:[%s237 + $0xb0] sm:$0xff] %vm701, %v677
          %734 = vst.msk [vmem:[%s237 + $0xb8] sm:$0xff] %vm701, %v676
          %735 = vst.msk [vmem:[%s237 + $0xc0] sm:$0xff] %vm701, %v677
          %736 = vst.msk [vmem:[%s237 + $0xc8] sm:$0xff] %vm701, %v676
          %737 = vst.msk [vmem:[%s237 + $0xd0] sm:$0xff] %vm701, %v677
          %738 = vst.msk [vmem:[%s237 + $0xd8] sm:$0xff] %vm701, %v676
          %739 = vst.msk [vmem:[%s237 + $0xe0] sm:$0xff] %vm701, %v677
          %740 = vst.msk [vmem:[%s237 + $0xe8] sm:$0xff] %vm701, %v676
          %741 = vst.msk [vmem:[%s237 + $0xf0] sm:$0xff] %vm701, %v677
          %742 = vst.msk [vmem:[%s237 + $0xf8] sm:$0xff] %vm701, %v676
          %743 = vst.msk [vmem:[%s237 + $0x100] sm:$0xff] %vm701, %v677
          %744 = vst.msk [vmem:[%s237 + $0x108] sm:$0xff] %vm701, %v676
          %745 = vst.msk [vmem:[%s237 + $0x110] sm:$0xff] %vm701, %v677
          %746 = vst.msk [vmem:[%s237 + $0x118] sm:$0xff] %vm701, %v676
          %747 = vst.msk [vmem:[%s237 + $0x120] sm:$0xff] %vm701, %v677
          %v748 = vld [vmem:[%s237 + $0x128] sm:$0xff]
          %v749 = vsel %vm726, %v676, %v748
          %750 = vst [vmem:[%s237 + $0x128] sm:$0xff] %v749
          %751 = vst.msk [vmem:[%s237 + $0x130] sm:$0xff] %vm701, %v676
          %752 = vst.msk [vmem:[%s237 + $0x138] sm:$0xff] %vm701, %v677
          %753 = vst.msk [vmem:[%s237 + $0x140] sm:$0xff] %vm701, %v676
          %754 = vst.msk [vmem:[%s237 + $0x148] sm:$0xff] %vm701, %v677
          %755 = vst.msk [vmem:[%s237 + $0x150] sm:$0xff] %vm701, %v676
          %756 = vst.msk [vmem:[%s237 + $0x158] sm:$0xff] %vm701, %v677
          %757 = vst.msk [vmem:[%s237 + $0x160] sm:$0xff] %vm701, %v676
          %758 = vst.msk [vmem:[%s237 + $0x168] sm:$0xff] %vm701, %v677
          %759 = vst.msk [vmem:[%s237 + $0x170] sm:$0xff] %vm701, %v676
          %760 = vst.msk [vmem:[%s237 + $0x178] sm:$0xff] %vm701, %v677
          %761 = vst.msk [vmem:[%s237 + $0x180] sm:$0xff] %vm701, %v676
          %762 = vst.msk [vmem:[%s237 + $0x188] sm:$0xff] %vm701, %v677
          %763 = vst.msk [vmem:[%s237 + $0x190] sm:$0xff] %vm701, %v676
          %764 = vst.msk [vmem:[%s237 + $0x198] sm:$0xff] %vm701, %v677
          %765 = vst.msk [vmem:[%s237 + $0x1a0] sm:$0xff] %vm701, %v676
          %766 = vst.msk [vmem:[%s237 + $0x1a8] sm:$0xff] %vm701, %v677
          %767 = vst.msk [vmem:[%s237 + $0x1b0] sm:$0xff] %vm701, %v676
          %768 = vst.msk [vmem:[%s237 + $0x1b8] sm:$0xff] %vm701, %v677
          %v769 = vld [vmem:[%s237 + $0x1c0] sm:$0xff]
          %v770 = vsel %vm726, %v676, %v769
          %771 = vst [vmem:[%s237 + $0x1c0] sm:$0xff] %v770
          %772 = vst.msk [vmem:[%s237 + $0x1c8] sm:$0xff] %vm701, %v676
          %773 = vst.msk [vmem:[%s237 + $0x1d0] sm:$0xff] %vm701, %v677
          %774 = vst.msk [vmem:[%s237 + $0x1d8] sm:$0xff] %vm701, %v676
          %775 = vst.msk [vmem:[%s237 + $0x1e0] sm:$0xff] %vm701, %v677
          %776 = vst.msk [vmem:[%s237 + $0x1e8] sm:$0xff] %vm701, %v676
          %777 = vst.msk [vmem:[%s237 + $0x1f0] sm:$0xff] %vm701, %v677
          %778 = vst.msk [vmem:[%s237 + $0x1f8] sm:$0xff] %vm701, %v676
          %779 = vst.msk [vmem:[%s237 + $0x200] sm:$0xff] %vm701, %v677
          %780 = vst.msk [vmem:[%s237 + $0x208] sm:$0xff] %vm701, %v676
          %781 = vst.msk [vmem:[%s237 + $0x210] sm:$0xff] %vm701, %v677
          %782 = vst.msk [vmem:[%s237 + $0x218] sm:$0xff] %vm701, %v676
          %783 = vst.msk [vmem:[%s237 + $0x220] sm:$0xff] %vm701, %v677
          %784 = vst.msk [vmem:[%s237 + $0x228] sm:$0xff] %vm701, %v676
          %785 = vst.msk [vmem:[%s237 + $0x230] sm:$0xff] %vm701, %v677
          %786 = vst.msk [vmem:[%s237 + $0x238] sm:$0xff] %vm701, %v676
          %787 = vst.msk [vmem:[%s237 + $0x240] sm:$0xff] %vm701, %v677
          %788 = vst.msk [vmem:[%s237 + $0x248] sm:$0xff] %vm701, %v676
          %789 = vst.msk [vmem:[%s237 + $0x250] sm:$0xff] %vm701, %v677
          %v790 = vld [vmem:[%s237 + $0x258] sm:$0xff]
          %v791 = vsel %vm726, %v676, %v790
          %792 = vst [vmem:[%s237 + $0x258] sm:$0xff] %v791
          %793 = vst.msk [vmem:[%s237 + $0x260] sm:$0xff] %vm701, %v676
          %794 = vst.msk [vmem:[%s237 + $0x268] sm:$0xff] %vm701, %v677
          %795 = vst.msk [vmem:[%s237 + $0x270] sm:$0xff] %vm701, %v676
          %796 = vst.msk [vmem:[%s237 + $0x278] sm:$0xff] %vm701, %v677
          %797 = vst.msk [vmem:[%s237 + $0x280] sm:$0xff] %vm701, %v676
          %798 = vst.msk [vmem:[%s237 + $0x288] sm:$0xff] %vm701, %v677
          %799 = vst.msk [vmem:[%s237 + $0x290] sm:$0xff] %vm701, %v676
          %800 = vst.msk [vmem:[%s237 + $0x298] sm:$0xff] %vm701, %v677
          %801 = vst.msk [vmem:[%s237 + $0x2a0] sm:$0xff] %vm701, %v676
          %802 = vst.msk [vmem:[%s237 + $0x2a8] sm:$0xff] %vm701, %v677
          %803 = vst.msk [vmem:[%s237 + $0x2b0] sm:$0xff] %vm701, %v676
          %804 = vst.msk [vmem:[%s237 + $0x2b8] sm:$0xff] %vm701, %v677
          %805 = vst.msk [vmem:[%s237 + $0x2c0] sm:$0xff] %vm701, %v676
          %806 = vst.msk [vmem:[%s237 + $0x2c8] sm:$0xff] %vm701, %v677
          %807 = vst.msk [vmem:[%s237 + $0x2d0] sm:$0xff] %vm701, %v676
          %808 = vst.msk [vmem:[%s237 + $0x2d8] sm:$0xff] %vm701, %v677
          %809 = vst.msk [vmem:[%s237 + $0x2e0] sm:$0xff] %vm701, %v676
          %810 = vst.msk [vmem:[%s237 + $0x2e8] sm:$0xff] %vm701, %v677
          %v811 = vld [vmem:[%s237 + $0x2f0] sm:$0xff]
          %v812 = vsel %vm726, %v676, %v811
          %813 = vst [vmem:[%s237 + $0x2f0] sm:$0xff] %v812
          %814 = vst.msk [vmem:[%s237 + $0x2f8] sm:$0xff] %vm701, %v676
          %815 = vst.msk [vmem:[%s237 + $0x300] sm:$0xff] %vm701, %v677
          %816 = vst.msk [vmem:[%s237 + $0x308] sm:$0xff] %vm701, %v676
          %817 = vst.msk [vmem:[%s237 + $0x310] sm:$0xff] %vm701, %v677
          %818 = vst.msk [vmem:[%s237 + $0x318] sm:$0xff] %vm701, %v676
          %819 = vst.msk [vmem:[%s237 + $0x320] sm:$0xff] %vm701, %v677
          %820 = vst.msk [vmem:[%s237 + $0x328] sm:$0xff] %vm701, %v676
          %821 = vst.msk [vmem:[%s237 + $0x330] sm:$0xff] %vm701, %v677
          %822 = vst.msk [vmem:[%s237 + $0x338] sm:$0xff] %vm701, %v676
          %823 = vst.msk [vmem:[%s237 + $0x340] sm:$0xff] %vm701, %v677
          %824 = vst.msk [vmem:[%s237 + $0x348] sm:$0xff] %vm701, %v676
          %825 = vst.msk [vmem:[%s237 + $0x350] sm:$0xff] %vm701, %v677
          %826 = vst.msk [vmem:[%s237 + $0x358] sm:$0xff] %vm701, %v676
          %827 = vst.msk [vmem:[%s237 + $0x360] sm:$0xff] %vm701, %v677
          %828 = vst.msk [vmem:[%s237 + $0x368] sm:$0xff] %vm701, %v676
          %829 = vst.msk [vmem:[%s237 + $0x370] sm:$0xff] %vm701, %v677
          %830 = vst.msk [vmem:[%s237 + $0x378] sm:$0xff] %vm701, %v676
          %831 = vst.msk [vmem:[%s237 + $0x380] sm:$0xff] %vm701, %v677
          %v832 = vld [vmem:[%s237 + $0x388] sm:$0xff]
          %v833 = vsel %vm726, %v676, %v832
          %834 = vst [vmem:[%s237 + $0x388] sm:$0xff] %v833
          %835 = vst.msk [vmem:[%s237 + $0x390] sm:$0xff] %vm701, %v676
          %836 = vst.msk [vmem:[%s237 + $0x398] sm:$0xff] %vm701, %v677
          %837 = vst.msk [vmem:[%s237 + $0x3a0] sm:$0xff] %vm701, %v676
          %838 = vst.msk [vmem:[%s237 + $0x3a8] sm:$0xff] %vm701, %v677
          %839 = vst.msk [vmem:[%s237 + $0x3b0] sm:$0xff] %vm701, %v676
          %840 = vst.msk [vmem:[%s237 + $0x3b8] sm:$0xff] %vm701, %v677
          %841 = vst.msk [vmem:[%s237 + $0x3c0] sm:$0xff] %vm701, %v676
          %842 = vst.msk [vmem:[%s237 + $0x3c8] sm:$0xff] %vm701, %v677
          %843 = vst.msk [vmem:[%s237 + $0x3d0] sm:$0xff] %vm701, %v676
          %844 = vst.msk [vmem:[%s237 + $0x3d8] sm:$0xff] %vm701, %v677
          %845 = vst.msk [vmem:[%s237 + $0x3e0] sm:$0xff] %vm701, %v676
          %846 = vst.msk [vmem:[%s237 + $0x3e8] sm:$0xff] %vm701, %v677
          %847 = vst.msk [vmem:[%s237 + $0x3f0] sm:$0xff] %vm701, %v676
          %848 = vst.msk [vmem:[%s237 + $0x3f8] sm:$0xff] %vm701, %v677
          %849 = vst.msk [vmem:[%s237 + $0x400] sm:$0xff] %vm701, %v676
          %850 = vst.msk [vmem:[%s237 + $0x408] sm:$0xff] %vm701, %v677
          %851 = vst.msk [vmem:[%s237 + $0x410] sm:$0xff] %vm701, %v676
          %852 = vst.msk [vmem:[%s237 + $0x418] sm:$0xff] %vm701, %v677
          %v853 = vld [vmem:[%s237 + $0x420] sm:$0xff]
          %v854 = vsel %vm726, %v676, %v853
          %855 = vst [vmem:[%s237 + $0x420] sm:$0xff] %v854
          %856 = vst.msk [vmem:[%s237 + $0x428] sm:$0xff] %vm701, %v676
          %857 = vst.msk [vmem:[%s237 + $0x430] sm:$0xff] %vm701, %v677
          %858 = vst.msk [vmem:[%s237 + $0x438] sm:$0xff] %vm701, %v676
          %859 = vst.msk [vmem:[%s237 + $0x440] sm:$0xff] %vm701, %v677
          %860 = vst.msk [vmem:[%s237 + $0x448] sm:$0xff] %vm701, %v676
          %861 = vst.msk [vmem:[%s237 + $0x450] sm:$0xff] %vm701, %v677
          %862 = vst.msk [vmem:[%s237 + $0x458] sm:$0xff] %vm701, %v676
          %863 = vst.msk [vmem:[%s237 + $0x460] sm:$0xff] %vm701, %v677
          %864 = vst.msk [vmem:[%s237 + $0x468] sm:$0xff] %vm701, %v676
          %865 = vst.msk [vmem:[%s237 + $0x470] sm:$0xff] %vm701, %v677
          %866 = vst.msk [vmem:[%s237 + $0x478] sm:$0xff] %vm701, %v676
          %867 = vst.msk [vmem:[%s237 + $0x480] sm:$0xff] %vm701, %v677
          %868 = vst.msk [vmem:[%s237 + $0x488] sm:$0xff] %vm701, %v676
          %869 = vst.msk [vmem:[%s237 + $0x490] sm:$0xff] %vm701, %v677
          %870 = vst.msk [vmem:[%s237 + $0x498] sm:$0xff] %vm701, %v676
          %871 = vst.msk [vmem:[%s237 + $0x4a0] sm:$0xff] %vm701, %v677
          %872 = vst.msk [vmem:[%s237 + $0x4a8] sm:$0xff] %vm701, %v676
          %873 = vst.msk [vmem:[%s237 + $0x4b0] sm:$0xff] %vm701, %v677
          %v874 = vld [vmem:[%s237 + $0x4b8] sm:$0xff]
          %v875 = vsel %vm726, %v676, %v874
          %876 = vst [vmem:[%s237 + $0x4b8] sm:$0xff] %v875
        $region36: #{tpu_custom_call.1} parent=31 // pred_fallthru
          _
        %p877 = pneg %p270
        // Predicated region
        $region37: #{tpu_custom_call.1} parent=31 // pred_check
          _
        $region38: #{tpu_custom_call.1} parent=31 // pred_check_branch
          %879 = sbr.rel (%p270) target = $region40
        $region39: #{tpu_custom_call.1} parent=31 // pred_region
          %vm880 = vcmask 1043456
          %vm881 = vcmask 187396
          %vm882 = vmor %vm881, %vm880
          %883 = vst.msk [vmem:[%s237] sm:$0xff] %vm882, 0
          %884 = vst.msk [vmem:[%s237 + $0x8] sm:$0xff] %vm882, 0
          %885 = vst.msk [vmem:[%s237 + $0x10] sm:$0xff] %vm882, 0
          %886 = vst.msk [vmem:[%s237 + $0x18] sm:$0xff] %vm882, 0
          %887 = vst.msk [vmem:[%s237 + $0x20] sm:$0xff] %vm882, 0
          %888 = vst.msk [vmem:[%s237 + $0x28] sm:$0xff] %vm882, 0
          %889 = vst.msk [vmem:[%s237 + $0x30] sm:$0xff] %vm882, 0
          %890 = vst.msk [vmem:[%s237 + $0x38] sm:$0xff] %vm882, 0
          %891 = vst.msk [vmem:[%s237 + $0x40] sm:$0xff] %vm882, 0
          %892 = vst.msk [vmem:[%s237 + $0x48] sm:$0xff] %vm882, 0
          %893 = vst.msk [vmem:[%s237 + $0x50] sm:$0xff] %vm882, 0
          %894 = vst.msk [vmem:[%s237 + $0x58] sm:$0xff] %vm882, 0
          %895 = vst.msk [vmem:[%s237 + $0x60] sm:$0xff] %vm882, 0
          %896 = vst.msk [vmem:[%s237 + $0x68] sm:$0xff] %vm882, 0
          %897 = vst.msk [vmem:[%s237 + $0x70] sm:$0xff] %vm882, 0
          %898 = vst.msk [vmem:[%s237 + $0x78] sm:$0xff] %vm882, 0
          %899 = vst.msk [vmem:[%s237 + $0x80] sm:$0xff] %vm882, 0
          %900 = vst.msk [vmem:[%s237 + $0x88] sm:$0xff] %vm882, 0
          %vm901 = vcmask 1043456
          %vm902 = vsmask.f32 3328
          %vm903 = vmand %vm901, %vm902
          %vm904 = vcmask 187396
          %vm905 = vsmask.f32 7424
          %vm906 = vmand %vm904, %vm905
          %vm907 = vmor %vm906, %vm903
          %v908 = vld [vmem:[%s237 + $0x90] sm:$0xff]
          %v909 = vsel %vm907, 0, %v908
          %910 = vst [vmem:[%s237 + $0x90] sm:$0xff] %v909
          %911 = vst.msk [vmem:[%s237 + $0x98] sm:$0xff] %vm882, 0
          %912 = vst.msk [vmem:[%s237 + $0xa0] sm:$0xff] %vm882, 0
          %913 = vst.msk [vmem:[%s237 + $0xa8] sm:$0xff] %vm882, 0
          %914 = vst.msk [vmem:[%s237 + $0xb0] sm:$0xff] %vm882, 0
          %915 = vst.msk [vmem:[%s237 + $0xb8] sm:$0xff] %vm882, 0
          %916 = vst.msk [vmem:[%s237 + $0xc0] sm:$0xff] %vm882, 0
          %917 = vst.msk [vmem:[%s237 + $0xc8] sm:$0xff] %vm882, 0
          %918 = vst.msk [vmem:[%s237 + $0xd0] sm:$0xff] %vm882, 0
          %919 = vst.msk [vmem:[%s237 + $0xd8] sm:$0xff] %vm882, 0
          %920 = vst.msk [vmem:[%s237 + $0xe0] sm:$0xff] %vm882, 0
          %921 = vst.msk [vmem:[%s237 + $0xe8] sm:$0xff] %vm882, 0
          %922 = vst.msk [vmem:[%s237 + $0xf0] sm:$0xff] %vm882, 0
          %923 = vst.msk [vmem:[%s237 + $0xf8] sm:$0xff] %vm882, 0
          %924 = vst.msk [vmem:[%s237 + $0x100] sm:$0xff] %vm882, 0
          %925 = vst.msk [vmem:[%s237 + $0x108] sm:$0xff] %vm882, 0
          %926 = vst.msk [vmem:[%s237 + $0x110] sm:$0xff] %vm882, 0
          %927 = vst.msk [vmem:[%s237 + $0x118] sm:$0xff] %vm882, 0
          %928 = vst.msk [vmem:[%s237 + $0x120] sm:$0xff] %vm882, 0
          %v929 = vld [vmem:[%s237 + $0x128] sm:$0xff]
          %v930 = vsel %vm907, 0, %v929
          %931 = vst [vmem:[%s237 + $0x128] sm:$0xff] %v930
          %932 = vst.msk [vmem:[%s237 + $0x130] sm:$0xff] %vm882, 0
          %933 = vst.msk [vmem:[%s237 + $0x138] sm:$0xff] %vm882, 0
          %934 = vst.msk [vmem:[%s237 + $0x140] sm:$0xff] %vm882, 0
          %935 = vst.msk [vmem:[%s237 + $0x148] sm:$0xff] %vm882, 0
          %936 = vst.msk [vmem:[%s237 + $0x150] sm:$0xff] %vm882, 0
          %937 = vst.msk [vmem:[%s237 + $0x158] sm:$0xff] %vm882, 0
          %938 = vst.msk [vmem:[%s237 + $0x160] sm:$0xff] %vm882, 0
          %939 = vst.msk [vmem:[%s237 + $0x168] sm:$0xff] %vm882, 0
          %940 = vst.msk [vmem:[%s237 + $0x170] sm:$0xff] %vm882, 0
          %941 = vst.msk [vmem:[%s237 + $0x178] sm:$0xff] %vm882, 0
          %942 = vst.msk [vmem:[%s237 + $0x180] sm:$0xff] %vm882, 0
          %943 = vst.msk [vmem:[%s237 + $0x188] sm:$0xff] %vm882, 0
          %944 = vst.msk [vmem:[%s237 + $0x190] sm:$0xff] %vm882, 0
          %945 = vst.msk [vmem:[%s237 + $0x198] sm:$0xff] %vm882, 0
          %946 = vst.msk [vmem:[%s237 + $0x1a0] sm:$0xff] %vm882, 0
          %947 = vst.msk [vmem:[%s237 + $0x1a8] sm:$0xff] %vm882, 0
          %948 = vst.msk [vmem:[%s237 + $0x1b0] sm:$0xff] %vm882, 0
          %949 = vst.msk [vmem:[%s237 + $0x1b8] sm:$0xff] %vm882, 0
          %v950 = vld [vmem:[%s237 + $0x1c0] sm:$0xff]
          %v951 = vsel %vm907, 0, %v950
          %952 = vst [vmem:[%s237 + $0x1c0] sm:$0xff] %v951
          %953 = vst.msk [vmem:[%s237 + $0x1c8] sm:$0xff] %vm882, 0
          %954 = vst.msk [vmem:[%s237 + $0x1d0] sm:$0xff] %vm882, 0
          %955 = vst.msk [vmem:[%s237 + $0x1d8] sm:$0xff] %vm882, 0
          %956 = vst.msk [vmem:[%s237 + $0x1e0] sm:$0xff] %vm882, 0
          %957 = vst.msk [vmem:[%s237 + $0x1e8] sm:$0xff] %vm882, 0
          %958 = vst.msk [vmem:[%s237 + $0x1f0] sm:$0xff] %vm882, 0
          %959 = vst.msk [vmem:[%s237 + $0x1f8] sm:$0xff] %vm882, 0
          %960 = vst.msk [vmem:[%s237 + $0x200] sm:$0xff] %vm882, 0
          %961 = vst.msk [vmem:[%s237 + $0x208] sm:$0xff] %vm882, 0
          %962 = vst.msk [vmem:[%s237 + $0x210] sm:$0xff] %vm882, 0
          %963 = vst.msk [vmem:[%s237 + $0x218] sm:$0xff] %vm882, 0
          %964 = vst.msk [vmem:[%s237 + $0x220] sm:$0xff] %vm882, 0
          %965 = vst.msk [vmem:[%s237 + $0x228] sm:$0xff] %vm882, 0
          %966 = vst.msk [vmem:[%s237 + $0x230] sm:$0xff] %vm882, 0
          %967 = vst.msk [vmem:[%s237 + $0x238] sm:$0xff] %vm882, 0
          %968 = vst.msk [vmem:[%s237 + $0x240] sm:$0xff] %vm882, 0
          %969 = vst.msk [vmem:[%s237 + $0x248] sm:$0xff] %vm882, 0
          %970 = vst.msk [vmem:[%s237 + $0x250] sm:$0xff] %vm882, 0
          %v971 = vld [vmem:[%s237 + $0x258] sm:$0xff]
          %v972 = vsel %vm907, 0, %v971
          %973 = vst [vmem:[%s237 + $0x258] sm:$0xff] %v972
          %974 = vst.msk [vmem:[%s237 + $0x260] sm:$0xff] %vm882, 0
          %975 = vst.msk [vmem:[%s237 + $0x268] sm:$0xff] %vm882, 0
          %976 = vst.msk [vmem:[%s237 + $0x270] sm:$0xff] %vm882, 0
          %977 = vst.msk [vmem:[%s237 + $0x278] sm:$0xff] %vm882, 0
          %978 = vst.msk [vmem:[%s237 + $0x280] sm:$0xff] %vm882, 0
          %979 = vst.msk [vmem:[%s237 + $0x288] sm:$0xff] %vm882, 0
          %980 = vst.msk [vmem:[%s237 + $0x290] sm:$0xff] %vm882, 0
          %981 = vst.msk [vmem:[%s237 + $0x298] sm:$0xff] %vm882, 0
          %982 = vst.msk [vmem:[%s237 + $0x2a0] sm:$0xff] %vm882, 0
          %983 = vst.msk [vmem:[%s237 + $0x2a8] sm:$0xff] %vm882, 0
          %984 = vst.msk [vmem:[%s237 + $0x2b0] sm:$0xff] %vm882, 0
          %985 = vst.msk [vmem:[%s237 + $0x2b8] sm:$0xff] %vm882, 0
          %986 = vst.msk [vmem:[%s237 + $0x2c0] sm:$0xff] %vm882, 0
          %987 = vst.msk [vmem:[%s237 + $0x2c8] sm:$0xff] %vm882, 0
          %988 = vst.msk [vmem:[%s237 + $0x2d0] sm:$0xff] %vm882, 0
          %989 = vst.msk [vmem:[%s237 + $0x2d8] sm:$0xff] %vm882, 0
          %990 = vst.msk [vmem:[%s237 + $0x2e0] sm:$0xff] %vm882, 0
          %991 = vst.msk [vmem:[%s237 + $0x2e8] sm:$0xff] %vm882, 0
          %v992 = vld [vmem:[%s237 + $0x2f0] sm:$0xff]
          %v993 = vsel %vm907, 0, %v992
          %994 = vst [vmem:[%s237 + $0x2f0] sm:$0xff] %v993
          %995 = vst.msk [vmem:[%s237 + $0x2f8] sm:$0xff] %vm882, 0
          %996 = vst.msk [vmem:[%s237 + $0x300] sm:$0xff] %vm882, 0
          %997 = vst.msk [vmem:[%s237 + $0x308] sm:$0xff] %vm882, 0
          %998 = vst.msk [vmem:[%s237 + $0x310] sm:$0xff] %vm882, 0
          %999 = vst.msk [vmem:[%s237 + $0x318] sm:$0xff] %vm882, 0
          %1000 = vst.msk [vmem:[%s237 + $0x320] sm:$0xff] %vm882, 0
          %1001 = vst.msk [vmem:[%s237 + $0x328] sm:$0xff] %vm882, 0
          %1002 = vst.msk [vmem:[%s237 + $0x330] sm:$0xff] %vm882, 0
          %1003 = vst.msk [vmem:[%s237 + $0x338] sm:$0xff] %vm882, 0
          %1004 = vst.msk [vmem:[%s237 + $0x340] sm:$0xff] %vm882, 0
          %1005 = vst.msk [vmem:[%s237 + $0x348] sm:$0xff] %vm882, 0
          %1006 = vst.msk [vmem:[%s237 + $0x350] sm:$0xff] %vm882, 0
          %1007 = vst.msk [vmem:[%s237 + $0x358] sm:$0xff] %vm882, 0
          %1008 = vst.msk [vmem:[%s237 + $0x360] sm:$0xff] %vm882, 0
          %1009 = vst.msk [vmem:[%s237 + $0x368] sm:$0xff] %vm882, 0
          %1010 = vst.msk [vmem:[%s237 + $0x370] sm:$0xff] %vm882, 0
          %1011 = vst.msk [vmem:[%s237 + $0x378] sm:$0xff] %vm882, 0
          %1012 = vst.msk [vmem:[%s237 + $0x380] sm:$0xff] %vm882, 0
          %v1013 = vld [vmem:[%s237 + $0x388] sm:$0xff]
          %v1014 = vsel %vm907, 0, %v1013
          %1015 = vst [vmem:[%s237 + $0x388] sm:$0xff] %v1014
          %1016 = vst.msk [vmem:[%s237 + $0x390] sm:$0xff] %vm882, 0
          %1017 = vst.msk [vmem:[%s237 + $0x398] sm:$0xff] %vm882, 0
          %1018 = vst.msk [vmem:[%s237 + $0x3a0] sm:$0xff] %vm882, 0
          %1019 = vst.msk [vmem:[%s237 + $0x3a8] sm:$0xff] %vm882, 0
          %1020 = vst.msk [vmem:[%s237 + $0x3b0] sm:$0xff] %vm882, 0
          %1021 = vst.msk [vmem:[%s237 + $0x3b8] sm:$0xff] %vm882, 0
          %1022 = vst.msk [vmem:[%s237 + $0x3c0] sm:$0xff] %vm882, 0
          %1023 = vst.msk [vmem:[%s237 + $0x3c8] sm:$0xff] %vm882, 0
          %1024 = vst.msk [vmem:[%s237 + $0x3d0] sm:$0xff] %vm882, 0
          %1025 = vst.msk [vmem:[%s237 + $0x3d8] sm:$0xff] %vm882, 0
          %1026 = vst.msk [vmem:[%s237 + $0x3e0] sm:$0xff] %vm882, 0
          %1027 = vst.msk [vmem:[%s237 + $0x3e8] sm:$0xff] %vm882, 0
          %1028 = vst.msk [vmem:[%s237 + $0x3f0] sm:$0xff] %vm882, 0
          %1029 = vst.msk [vmem:[%s237 + $0x3f8] sm:$0xff] %vm882, 0
          %1030 = vst.msk [vmem:[%s237 + $0x400] sm:$0xff] %vm882, 0
          %1031 = vst.msk [vmem:[%s237 + $0x408] sm:$0xff] %vm882, 0
          %1032 = vst.msk [vmem:[%s237 + $0x410] sm:$0xff] %vm882, 0
          %1033 = vst.msk [vmem:[%s237 + $0x418] sm:$0xff] %vm882, 0
          %v1034 = vld [vmem:[%s237 + $0x420] sm:$0xff]
          %v1035 = vsel %vm907, 0, %v1034
          %1036 = vst [vmem:[%s237 + $0x420] sm:$0xff] %v1035
          %1037 = vst.msk [vmem:[%s237 + $0x428] sm:$0xff] %vm882, 0
          %1038 = vst.msk [vmem:[%s237 + $0x430] sm:$0xff] %vm882, 0
          %1039 = vst.msk [vmem:[%s237 + $0x438] sm:$0xff] %vm882, 0
          %1040 = vst.msk [vmem:[%s237 + $0x440] sm:$0xff] %vm882, 0
          %1041 = vst.msk [vmem:[%s237 + $0x448] sm:$0xff] %vm882, 0
          %1042 = vst.msk [vmem:[%s237 + $0x450] sm:$0xff] %vm882, 0
          %1043 = vst.msk [vmem:[%s237 + $0x458] sm:$0xff] %vm882, 0
          %1044 = vst.msk [vmem:[%s237 + $0x460] sm:$0xff] %vm882, 0
          %1045 = vst.msk [vmem:[%s237 + $0x468] sm:$0xff] %vm882, 0
          %1046 = vst.msk [vmem:[%s237 + $0x470] sm:$0xff] %vm882, 0
          %1047 = vst.msk [vmem:[%s237 + $0x478] sm:$0xff] %vm882, 0
          %1048 = vst.msk [vmem:[%s237 + $0x480] sm:$0xff] %vm882, 0
          %1049 = vst.msk [vmem:[%s237 + $0x488] sm:$0xff] %vm882, 0
          %1050 = vst.msk [vmem:[%s237 + $0x490] sm:$0xff] %vm882, 0
          %1051 = vst.msk [vmem:[%s237 + $0x498] sm:$0xff] %vm882, 0
          %1052 = vst.msk [vmem:[%s237 + $0x4a0] sm:$0xff] %vm882, 0
          %1053 = vst.msk [vmem:[%s237 + $0x4a8] sm:$0xff] %vm882, 0
          %1054 = vst.msk [vmem:[%s237 + $0x4b0] sm:$0xff] %vm882, 0
          %v1055 = vld [vmem:[%s237 + $0x4b8] sm:$0xff]
          %v1056 = vsel %vm907, 0, %v1055
          %1057 = vst [vmem:[%s237 + $0x4b8] sm:$0xff] %v1056
        $region40: #{tpu_custom_call.1} parent=31 // pred_fallthru
          _
        %s1058 = sand.u32 %s138, 1
        %s1059 = scalar_lea.sflag [#allocation5], %s1058
        %s1060 = sand.u32 %s138, 1
        %s1061 = smul.addr %s1060, 1216
        %s1062 = scalar_lea.vmem [#allocation4], %s1061
        // Predicated region
        $region41: #{tpu_custom_call.1} parent=31 // pred_check
          %p1063 = pneg %p148
        $region42: #{tpu_custom_call.1} parent=31 // pred_check_branch
          %1065 = sbr.rel (%p1063) target = $region44
        $region43: #{tpu_custom_call.1} parent=31 // pred_region
          #allocation7 [shape = 'u32[6]{0}', space=smem, size = 0x18, scoped, tag = 'DMA stride descriptor']
          %s1066 = smul.u32 %s26, 7
          %s1067 = sadd.s32 %s1066, %s27
          %s1069 = ssub.s32 19456, 19456
          %1070 = vsyncadd %s1059, %s1069
          %s1071 = smul.addr %s28, 38
          %s1072 = smul.addr %s1067, 5168
          %s1073 = sadd.s32 %s1071, %s1072
          %s1074 = smul.addr %s1073, 64
          %s1075 = scalar_lea.hbm %s3, %s1074
          %s1077 = sshll.u32 1, 14
          %s1078 = sxor.u32 4294967295, %s1077
          %s1081 = sshll.u32 7, 18
          %s1082 = sxor.u32 4294967295, %s1081
          %s1083 = sand.u32 0, %s1082
          %s1085 = sor.u32 %s1083, 0
          %s1086 = sshll.u32 %s1062, 4
          %s1087 = int_to_ptr.vmem [resolvable:$true] %s1086
          %1093 = sst [smem:[#allocation7]] 2432
          %s1094 = scalar_lea.smem [#allocation7], 1
          %1095 = sst [smem:[%s1094]] 41344
          %s1096 = scalar_lea.smem [#allocation7], 2
          %1097 = sst [smem:[%s1096]] 19
          %s1098 = scalar_lea.smem [#allocation7], 3
          %1099 = sst [smem:[%s1098]] 128
          %s1100 = scalar_lea.smem [#allocation7], 4
          %1101 = sst [smem:[%s1100]] 128
          %s1102 = scalar_lea.smem [#allocation7], 5
          %1103 = sst [smem:[%s1102]] 8
          %1105 = dma.general %s1087, 19456, %s1075, %s1059, 131072, [#allocation7], %s1085, 0
        $region44: #{tpu_custom_call.1} parent=31 // pred_fallthru
          _
      $region32: #{tpu_custom_call.1} parent=5 // pred_fallthru
        _
      %p1106 = scmp.le.s32.totalorder 2, %s16
      // Predicated region
      $region45: #{tpu_custom_call.1} parent=5 // pred_check
        %p1107 = pneg %p1106
      $region46: #{tpu_custom_call.1} parent=5 // pred_check_branch
        %1109 = sbr.rel (%p1107) target = $region48
      $region47: #{tpu_custom_call.1} parent=5 // pred_region
        %s1110 = ssub.s32 %s16, 2
        // Predicated region
        $region49: #{tpu_custom_call.1} parent=47 // pred_check
          %p1111 = pneg %p154
        $region50: #{tpu_custom_call.1} parent=47 // pred_check_branch
          %1113 = sbr.rel (%p1111) target = $region52
        $region51: #{tpu_custom_call.1} parent=47 // pred_region
          %s1114 = sand.u32 %s139, 1
          %s1115 = scalar_lea.sflag [#allocation5], %s1114
          %s1116 = sand.u32 %s139, 1
          %s1117 = smul.addr %s1116, 1216
          %s1118 = scalar_lea.vmem [#allocation4], %s1117
          %1119 = dma.done %s1115, 19456
        $region52: #{tpu_custom_call.1} parent=47 // pred_fallthru
          _
      $region48: #{tpu_custom_call.1} parent=5 // pred_fallthru
        _
    $region6: #{tpu_custom_call.1} parent=1 // loop_footer
      %s20 = sadd.s32 1, %s16
    $region7: #{tpu_custom_call.1} parent=1 // loop_footer_branch
      %15 = sbr.rel target = $region3
    $region8: #{tpu_custom_call.1} parent=1 // loop_exit
      _
    %1120 = vsyncpa [#allocation5], 1
    %s1121 = scalar_lea.sflag [#allocation5], 1
    %1122 = vsyncpa %s1121, 1

</llo_original>
